<compile_context>
chip_gen: v5e
topology: v5e:2x2
jax: 0.10.0
libtpu: 0.0.40
codegen_flags: <defaults>
</compile_context>

<pallas_src>
import jax
import jax.numpy as jnp
from jax.experimental import pallas as pl
from jax.experimental.pallas import tpu as pltpu

HID1 = 128        # first hidden width  (nn.Linear(input_dim, 128))
HID2 = 64         # second hidden width (nn.Linear(128, 64))
HID2_PAD = 128    # zero-padded so layer-2 activations are lane-full (exact math)

MAX_TILE_B = 2048             # rows per grid step, upper cap
TILE_ALIGN = 256              # multiple of 256 (v6e/v7x MXU rows) and of 128 (v5e)
VMEM_BUDGET = 12 * 1024 * 1024   # per-step working-set budget (safe on v5e's 16 MiB)
VMEM_LIMIT = 32 * 1024 * 1024    # raise v5e's 16 MiB scoped default; == v6e/v7x defaults


def _discriminator_kernel(x_ref, w1_ref, b1_ref, w2_ref, b2_ref, w3_ref, b3_ref,
                          o_ref):
    # Layer 1: Linear(input_dim, 128) + LeakyReLU(0.2).
    # x arrives from HBM as f32 (read exactly once) and is cast to bf16 here
    # (cheap VPU pack) so the MXU sees bf16 operands; accumulation is f32.
    xb = x_ref[...].astype(jnp.bfloat16)
    h1 = jnp.dot(xb, w1_ref[...],
                 preferred_element_type=jnp.float32) + b1_ref[...]
    h1 = jnp.maximum(h1, 0.2 * h1)          # LeakyReLU(0.2): mul + max only

    # Layer 2: Linear(128, 64) (zero-padded to 128 outputs, exact) + LeakyReLU.
    h2 = jnp.dot(h1.astype(jnp.bfloat16), w2_ref[...],
                 preferred_element_type=jnp.float32) + b2_ref[...]
    h2 = jnp.maximum(h2, 0.2 * h2)

    # Layer 3: Linear(64, 1) + Sigmoid as a standard (tile_b,128) x (128,1)
    # matmul — no transposed dot_general, so no hidden XLU transpose of the
    # (tile_b,128) activation tile.
    h3 = jnp.dot(h2.astype(jnp.bfloat16), w3_ref[...],
                 preferred_element_type=jnp.float32) + b3_ref[...]
    o_ref[...] = jax.nn.sigmoid(h3).astype(o_ref.dtype)


def _round_up(x, m):
    return ((x + m - 1) // m) * m


def _step_vmem_bytes(tile_b, input_dim):
    """Rough per-grid-step VMEM footprint used to cap tile_b."""
    x_bytes = 2 * tile_b * input_dim * 4                      # double-buffered f32 x tile
    act = tile_b * HID1 * (4 + 2) + tile_b * HID2_PAD * (4 + 2)  # f32 h1/h2 + bf16 copies
    out = 2 * tile_b * 4                                      # double-buffered f32 out tile
    weights = ((input_dim * HID1 + HID1 * HID2_PAD + HID2_PAD) * 2
               + (HID1 + HID2_PAD + 1) * 4)                   # resident bf16 W + f32 b
    return x_bytes + act + out + weights


def _choose_tile_b(batch, input_dim):
    """Largest aligned tile that keeps >=2 grid steps (when batch allows) and
    fits the per-step VMEM budget on all generations."""
    tile = min(MAX_TILE_B, _round_up(max(1, pl.cdiv(batch, 2)), TILE_ALIGN))
    while tile > TILE_ALIGN and _step_vmem_bytes(tile, input_dim) > VMEM_BUDGET:
        tile -= TILE_ALIGN
    return tile


def discriminator_forward(x, params, *, tile_b=None):
    """x: [B, input_dim] float32 -> [B, 1] float32 (sigmoid probabilities).

    params: prepared (bf16 weights, f32 biases) from `prepare_params`.
    tile_b: batch rows per grid step; auto-chosen if None.
    """
    w1, b1, w2, b2, w3, b3 = params
    B, D = x.shape
    if tile_b is None:
        tile_b = _choose_tile_b(B, D)
    num_tiles = pl.cdiv(B, tile_b)   # tail handled by Pallas edge-block masking

    def resident(arr):
        # Weights/biases: constant block index -> stay resident in VMEM.
        return pl.BlockSpec(arr.shape, lambda i: (0, 0))

    out = pl.pallas_call(
        _discriminator_kernel,
        out_shape=jax.ShapeDtypeStruct((B, 1), jnp.float32),
        grid_spec=pltpu.PrefetchScalarGridSpec(
            num_scalar_prefetch=0,
            grid=(num_tiles,),
            in_specs=[
                # x tile: (tile_b, D); D as last block dim is legal because it
                # equals the full array dim. Partial last block: padded reads.
                pl.BlockSpec((tile_b, D), lambda i: (i, 0)),
                resident(w1), resident(b1),
                resident(w2), resident(b2),
                resident(w3), resident(b3),
            ],
            # (tile_b, 1) block: last dim equals the full array dim (legal);
            # writes past B on the last block are discarded by Pallas.
            out_specs=pl.BlockSpec((tile_b, 1), lambda i: (i, 0)),
        ),
        compiler_params=pltpu.CompilerParams(
            dimension_semantics=("parallel",),   # shard grid across v7x TCs
            vmem_limit_bytes=VMEM_LIMIT),
    )(x, w1, b1, w2, b2, w3, b3)
    return out


def init_params(key, input_dim):
    """Deterministic synthetic weights in PyTorch-equivalent f32, stored
    transposed ([in, out]); biases kept 2D [1, out]."""
    k1, k2, k3, k4, k5, k6 = jax.random.split(key, 6)
    scale = 0.1
    w1 = scale * jax.random.normal(k1, (input_dim, HID1), jnp.float32)
    b1 = scale * jax.random.normal(k2, (1, HID1), jnp.float32)
    w2 = scale * jax.random.normal(k3, (HID1, HID2), jnp.float32)
    b2 = scale * jax.random.normal(k4, (1, HID2), jnp.float32)
    w3 = scale * jax.random.normal(k5, (HID2, 1), jnp.float32)
    b3 = scale * jax.random.normal(k6, (1, 1), jnp.float32)
    return (w1, b1, w2, b2, w3, b3)


def prepare_params(raw):
    """One-time layout prep: zero-pad hidden-2 width 64 -> 128 (exact: padded
    features are 0 and the padded w3 rows are 0), cast matmul operands to
    bf16, keep biases in f32. input_dim (layer-1 K) is NOT padded."""
    w1, b1, w2, b2, w3, b3 = raw
    pad = HID2_PAD - HID2
    w2p = jnp.pad(w2, ((0, 0), (0, pad)))
    b2p = jnp.pad(b2, ((0, 0), (0, pad)))
    w3p = jnp.pad(w3, ((0, pad), (0, 0)))            # (HID2_PAD, 1)
    return (w1.astype(jnp.bfloat16), b1.astype(jnp.float32),
            w2p.astype(jnp.bfloat16), b2p.astype(jnp.float32),
            w3p.astype(jnp.bfloat16), b3.astype(jnp.float32))


def reference_forward_f32(x, raw):
    """Pure-f32 reference matching the PyTorch module exactly."""
    w1, b1, w2, b2, w3, b3 = raw
    h = x @ w1 + b1
    h = jnp.where(h > 0, h, 0.2 * h)
    h = h @ w2 + b2
    h = jnp.where(h > 0, h, 0.2 * h)
    h = h @ w3 + b3
    return jax.nn.sigmoid(h)


def reference_forward_bf16(x, prep):
    """Reference mirroring the kernel's bf16-operand / f32-accumulate math."""
    w1, b1, w2, b2, w3, b3 = prep
    h = jnp.dot(x.astype(jnp.bfloat16), w1,
                preferred_element_type=jnp.float32) + b1
    h = jnp.maximum(h, 0.2 * h)
    h = jnp.dot(h.astype(jnp.bfloat16), w2,
                preferred_element_type=jnp.float32) + b2
    h = jnp.maximum(h, 0.2 * h)
    h = jnp.dot(h.astype(jnp.bfloat16), w3,
                preferred_element_type=jnp.float32) + b3
    return jax.nn.sigmoid(h)


if __name__ == "__main__":
    key = jax.random.PRNGKey(0)
    kx, kp = jax.random.split(key)

    # Small demo shapes; batch intentionally NOT a multiple of the tile to
    # exercise the edge-block (masked tail) path.  Auto tile -> 256, grid of 2.
    batch, input_dim = 300, 32
    x = jax.random.normal(kx, (batch, input_dim), jnp.float32)

    raw_params = init_params(kp, input_dim)
    params = prepare_params(raw_params)

    out = discriminator_forward(x, params)
    out = jax.block_until_ready(out)
    assert out.shape == (batch, 1)

    # Tight check vs a reference using identical bf16-operand math.
    ref_bf16 = reference_forward_bf16(x, params)
    assert jnp.allclose(out, ref_bf16, atol=1e-4, rtol=1e-4), \
        "mismatch vs bf16-matched reference"

    # Loose check vs the pure-f32 PyTorch-equivalent forward (bf16 operand
    # rounding only; sigmoid outputs differ by ~1e-3 at these scales).
    ref_f32 = reference_forward_f32(x, raw_params)
    assert jnp.allclose(out, ref_f32, atol=5e-2), "mismatch vs f32 reference"

    print("KERNEL_OK")
</pallas_src>

<mosaic_0001>
module attributes {stable_mosaic.version = 11 : i64} {
  func.func @_discriminator_kernel(%arg0: i32, %arg1: memref<256x32xf32, #tpu.memory_space<vmem>>, %arg2: memref<32x128xbf16, #tpu.memory_space<vmem>>, %arg3: memref<1x128xf32, #tpu.memory_space<vmem>>, %arg4: memref<128x128xbf16, #tpu.memory_space<vmem>>, %arg5: memref<1x128xf32, #tpu.memory_space<vmem>>, %arg6: memref<128x1xbf16, #tpu.memory_space<vmem>>, %arg7: memref<1x1xf32, #tpu.memory_space<vmem>>, %arg8: memref<256x1xf32, #tpu.memory_space<vmem>>) attributes {dimension_semantics = [#tpu.dimension_semantics<parallel>], iteration_bounds = array<i64: 2>, scalar_prefetch = 0 : i64, scratch_operands = 0 : i64, tpu.core_type = #tpu.core_type<tc>, window_params = [{transform_indices = @transform_0, window_bounds = array<i64: 256, 32>}, {pipeline_mode = #tpu.pipeline_mode<synchronous>, transform_indices = @transform_1, window_bounds = array<i64: 32, 128>}, {pipeline_mode = #tpu.pipeline_mode<synchronous>, transform_indices = @transform_2, window_bounds = array<i64: 1, 128>}, {pipeline_mode = #tpu.pipeline_mode<synchronous>, transform_indices = @transform_3, window_bounds = array<i64: 128, 128>}, {pipeline_mode = #tpu.pipeline_mode<synchronous>, transform_indices = @transform_4, window_bounds = array<i64: 1, 128>}, {pipeline_mode = #tpu.pipeline_mode<synchronous>, transform_indices = @transform_5, window_bounds = array<i64: 128, 1>}, {pipeline_mode = #tpu.pipeline_mode<synchronous>, transform_indices = @transform_6, window_bounds = array<i64: 1, 1>}, {transform_indices = @transform_7, window_bounds = array<i64: 256, 1>}]} {
    %c0 = arith.constant 0 : index
    %c0_0 = arith.constant 0 : index
    %0 = vector.load %arg1[%c0, %c0_0] : memref<256x32xf32, #tpu.memory_space<vmem>>, vector<256x32xf32>
    %1 = arith.truncf %0 : vector<256x32xf32> to vector<256x32xbf16>
    %c0_1 = arith.constant 0 : index
    %c0_2 = arith.constant 0 : index
    %2 = vector.load %arg2[%c0_1, %c0_2] : memref<32x128xbf16, #tpu.memory_space<vmem>>, vector<32x128xbf16>
    %cst = arith.constant dense<0.000000e+00> : vector<256x128xf32>
    %3 = tpu.matmul %1, %2, %cst {dimension_numbers = #tpu.dot_dimension_numbers<[1], [0], [0], [1], [0, 0, 1, 1], [], []>} : vector<256x32xbf16>, vector<32x128xbf16>, vector<256x128xf32> -> vector<256x128xf32>
    %c0_3 = arith.constant 0 : index
    %c0_4 = arith.constant 0 : index
    %4 = vector.load %arg3[%c0_3, %c0_4] : memref<1x128xf32, #tpu.memory_space<vmem>>, vector<1x128xf32>
    %5 = vector.broadcast %4 : vector<1x128xf32> to vector<256x128xf32>
    %6 = arith.addf %3, %5 : vector<256x128xf32>
    %cst_5 = arith.constant 2.000000e-01 : f32
    %7 = vector.broadcast %cst_5 : f32 to vector<256x128xf32>
    %8 = arith.mulf %7, %6 : vector<256x128xf32>
    %9 = arith.maximumf %6, %8 : vector<256x128xf32>
    %10 = arith.truncf %9 : vector<256x128xf32> to vector<256x128xbf16>
    %c0_6 = arith.constant 0 : index
    %c0_7 = arith.constant 0 : index
    %11 = vector.load %arg4[%c0_6, %c0_7] : memref<128x128xbf16, #tpu.memory_space<vmem>>, vector<128x128xbf16>
    %cst_8 = arith.constant dense<0.000000e+00> : vector<256x128xf32>
    %12 = tpu.matmul %10, %11, %cst_8 {dimension_numbers = #tpu.dot_dimension_numbers<[1], [0], [0], [1], [0, 0, 1, 1], [], []>} : vector<256x128xbf16>, vector<128x128xbf16>, vector<256x128xf32> -> vector<256x128xf32>
    %c0_9 = arith.constant 0 : index
    %c0_10 = arith.constant 0 : index
    %13 = vector.load %arg5[%c0_9, %c0_10] : memref<1x128xf32, #tpu.memory_space<vmem>>, vector<1x128xf32>
    %14 = vector.broadcast %13 : vector<1x128xf32> to vector<256x128xf32>
    %15 = arith.addf %12, %14 : vector<256x128xf32>
    %cst_11 = arith.constant 2.000000e-01 : f32
    %16 = vector.broadcast %cst_11 : f32 to vector<256x128xf32>
    %17 = arith.mulf %16, %15 : vector<256x128xf32>
    %18 = arith.maximumf %15, %17 : vector<256x128xf32>
    %19 = arith.truncf %18 : vector<256x128xf32> to vector<256x128xbf16>
    %c0_12 = arith.constant 0 : index
    %c0_13 = arith.constant 0 : index
    %20 = vector.load %arg6[%c0_12, %c0_13] : memref<128x1xbf16, #tpu.memory_space<vmem>>, vector<128x1xbf16>
    %cst_14 = arith.constant dense<0.000000e+00> : vector<256x1xf32>
    %21 = tpu.matmul %19, %20, %cst_14 {dimension_numbers = #tpu.dot_dimension_numbers<[1], [0], [0], [1], [0, 0, 1, 1], [], []>} : vector<256x128xbf16>, vector<128x1xbf16>, vector<256x1xf32> -> vector<256x1xf32>
    %c0_15 = arith.constant 0 : index
    %c0_16 = arith.constant 0 : index
    %22 = vector.load %arg7[%c0_15, %c0_16] : memref<1x1xf32, #tpu.memory_space<vmem>>, vector<1x1xf32>
    %23 = vector.broadcast %22 : vector<1x1xf32> to vector<256x1xf32>
    %24 = arith.addf %21, %23 : vector<256x1xf32>
    %25 = arith.negf %24 : vector<256x1xf32>
    %26 = math.exp %25 : vector<256x1xf32>
    %cst_17 = arith.constant 1.000000e+00 : f32
    %27 = vector.broadcast %cst_17 : f32 to vector<256x1xf32>
    %28 = arith.addf %27, %26 : vector<256x1xf32>
    %29 = arith.divf %27, %28 : vector<256x1xf32>
    %c0_18 = arith.constant 0 : index
    %c0_19 = arith.constant 0 : index
    %30 = vector.load %arg8[%c0_18, %c0_19] : memref<256x1xf32, #tpu.memory_space<vmem>>, vector<256x1xf32>
    tpu.vector_store %arg8[%c0_18, %c0_19], %29 {strides = array<i32>} : memref<256x1xf32, #tpu.memory_space<vmem>>, vector<256x1xf32>,
    return
  }
  func.func @transform_0(%arg0: i32) -> (i32, i32) {
    %c0_i32 = arith.constant 0 : i32
    %c0_i32_0 = arith.constant 0 : i32
    return %arg0, %c0_i32 : i32, i32
  }
  func.func @transform_1(%arg0: i32) -> (i32, i32) {
    %c0_i32 = arith.constant 0 : i32
    %c0_i32_0 = arith.constant 0 : i32
    %c0_i32_1 = arith.constant 0 : i32
    return %c0_i32, %c0_i32_0 : i32, i32
  }
  func.func @transform_2(%arg0: i32) -> (i32, i32) {
    %c0_i32 = arith.constant 0 : i32
    %c0_i32_0 = arith.constant 0 : i32
    %c0_i32_1 = arith.constant 0 : i32
    return %c0_i32, %c0_i32_0 : i32, i32
  }
  func.func @transform_3(%arg0: i32) -> (i32, i32) {
    %c0_i32 = arith.constant 0 : i32
    %c0_i32_0 = arith.constant 0 : i32
    %c0_i32_1 = arith.constant 0 : i32
    return %c0_i32, %c0_i32_0 : i32, i32
  }
  func.func @transform_4(%arg0: i32) -> (i32, i32) {
    %c0_i32 = arith.constant 0 : i32
    %c0_i32_0 = arith.constant 0 : i32
    %c0_i32_1 = arith.constant 0 : i32
    return %c0_i32, %c0_i32_0 : i32, i32
  }
  func.func @transform_5(%arg0: i32) -> (i32, i32) {
    %c0_i32 = arith.constant 0 : i32
    %c0_i32_0 = arith.constant 0 : i32
    %c0_i32_1 = arith.constant 0 : i32
    return %c0_i32, %c0_i32_0 : i32, i32
  }
  func.func @transform_6(%arg0: i32) -> (i32, i32) {
    %c0_i32 = arith.constant 0 : i32
    %c0_i32_0 = arith.constant 0 : i32
    %c0_i32_1 = arith.constant 0 : i32
    return %c0_i32, %c0_i32_0 : i32, i32
  }
  func.func @transform_7(%arg0: i32) -> (i32, i32) {
    %c0_i32 = arith.constant 0 : i32
    %c0_i32_0 = arith.constant 0 : i32
    return %arg0, %c0_i32 : i32, i32
  }
}

</mosaic_0001>

<llo_original>
// kernel: tpu_custom_call.1
$region0: #{tpu_custom_call.1}
  #allocation0 [shape = 'u32[]', space=smem, size = 0x4, offset = 0x4, fixed_abs, tag = 'smem constant byte address 0x4 - core index']
  #allocation1 [shape = 'u32[72,128]{1,0:T(1,128)}', space=vmem, size = 0x9000, scoped, tag = 'internal scratch']
  #allocation2 [shape = 'f32[1,1]{1,0:T(1,128)S(1)}', space=vmem, size = 0x200, scoped, tag = 'scoped memory for tpu_custom_call.1']
  %s0 = inlined_call_operand.vmem [shape: f32[300,32], index: 0, kind: input, shape index: {}]
  %s1 = inlined_call_operand.vmem [shape: bf16[32,128], index: 1, kind: input, shape index: {}]
  %s2 = inlined_call_operand.vmem [shape: f32[1,128], index: 2, kind: input, shape index: {}]
  %s3 = inlined_call_operand.vmem [shape: bf16[128,128], index: 3, kind: input, shape index: {}]
  %s4 = inlined_call_operand.vmem [shape: f32[1,128], index: 4, kind: input, shape index: {}]
  %s5 = inlined_call_operand.vmem [shape: bf16[128,1], index: 5, kind: input, shape index: {}]
  %s6 = inlined_call_operand.<no memory space> [shape: f32[1,1], index: 6, kind: input, shape index: {}]
  %s7 = inlined_call_operand.vmem [shape: f32[300,1], index: 7, kind: output, shape index: {}]
  %s8 = sld [smem:[#allocation0]]
  $region109: #{tpu_custom_call.1} parent=0
    _
  %s10 = ssub.s32 1, %s8
  %s11 = scalar_select 0, %s10, %s8
  %v12 = vstv %s6
  %13 = vst [vmem:[#allocation2] sm:$0x1] %v12
  $region1: #{tpu_custom_call.1} parent=0
    #allocation3 [shape = 'u8[262144]{0}', space=vmem, size = 0x40000, scoped, tag = 'output window, operand 0']
    loop: start=0, step=1, limit=4
    $region2: #{tpu_custom_call.1} parent=1 // loop_pre_header
      _
    $region3: #{tpu_custom_call.1} parent=1 // loop_header
      %s15 = sphi 0, %s19
      %p16 = scmp.ge.s32.totalorder %s15, 4
      %s25 = sphi 0, %s27
      %s28 = sphi 0, %s25
      %s29 = sphi 0, %s28
      %s45 = sphi 0, %s29
      %s49 = sphi 0, %s49
      %s51 = sphi 0, %s49
      %s52 = sphi 0, %s51
      %s66 = sphi 0, %s52
      %s70 = sphi 0, %s70
      %s72 = sphi 0, %s70
      %s73 = sphi 0, %s72
      %s87 = sphi 0, %s73
      %s91 = sphi 0, %s91
      %s93 = sphi 0, %s91
      %s94 = sphi 0, %s93
      %s108 = sphi 0, %s94
      %s112 = sphi 0, %s112
      %s114 = sphi 0, %s112
      %s115 = sphi 0, %s114
      %s129 = sphi 0, %s115
      %s133 = sphi 0, %s133
      %s135 = sphi 0, %s133
      %s136 = sphi 0, %s135
      %s150 = sphi 0, %s136
      %s154 = sphi 0, %s154
      %s156 = sphi 0, %s154
      %s157 = sphi 0, %s156
      %s171 = sphi 0, %s157
      %s177 = sphi 0, %s179
      %s180 = sphi 0, %s177
      %s181 = sphi 0, %s180
      %s197 = sphi 0, %s181
    $region4: #{tpu_custom_call.1} parent=1 // loop_header_branch
      %18 = sbr.rel (%p16) target = $region8
    $region5: #{tpu_custom_call.1} parent=1 // loop_body
      %s20 = ssub.s32 %s15, 1
      %s21 = ssub.s32 %s15, 2
      %s22 = sadd.s32 %s15, 1
      %s23 = ssub.s32 %s15, %s22
      %p24 = scmp.eq.s32.totalorder %s23, 0
      %s26 = sadd.s32 %s25, 1
      %s27 = scalar_select %p24, %s25, %s26
      %p30 = pneg %p24
      %p31 = scmp.eq.s32.totalorder %s15, 1
      %p32 = por %p30, %p31
      %p33 = scmp.ne.s32.totalorder %s25, %s28
      %p34 = scmp.eq.s32.totalorder %s15, 0
      %p35 = por %p33, %p34
      %p36 = scmp.ne.s32.totalorder %s25, %s28
      %p37 = scmp.eq.s32.totalorder %s20, 1
      %p38 = por %p36, %p37
      %p39 = scmp.ne.s32.totalorder %s28, %s29
      %p40 = scmp.eq.s32.totalorder %s20, 0
      %p41 = por %p39, %p40
      %p42 = scmp.ne.s32.totalorder %s28, %s29
      %p43 = scmp.eq.s32.totalorder %s21, 1
      %p44 = por %p42, %p43
      %p46 = scmp.ne.s32.totalorder %s29, %s45
      %p47 = scmp.eq.s32.totalorder %s21, 0
      %p48 = por %p46, %p47
      %s50 = sadd.s32 %s49, 1
      %p53 = scmp.eq.s32.totalorder %s15, 1
      %p54 = scmp.ne.s32.totalorder %s49, %s51
      %p55 = scmp.eq.s32.totalorder %s15, 0
      %p56 = por %p54, %p55
      %p57 = scmp.ne.s32.totalorder %s49, %s51
      %p58 = scmp.eq.s32.totalorder %s20, 1
      %p59 = por %p57, %p58
      %p60 = scmp.ne.s32.totalorder %s51, %s52
      %p61 = scmp.eq.s32.totalorder %s20, 0
      %p62 = por %p60, %p61
      %p63 = scmp.ne.s32.totalorder %s51, %s52
      %p64 = scmp.eq.s32.totalorder %s21, 1
      %p65 = por %p63, %p64
      %p67 = scmp.ne.s32.totalorder %s52, %s66
      %p68 = scmp.eq.s32.totalorder %s21, 0
      %p69 = por %p67, %p68
      %s71 = sadd.s32 %s70, 1
      %p74 = scmp.eq.s32.totalorder %s15, 1
      %p75 = scmp.ne.s32.totalorder %s70, %s72
      %p76 = scmp.eq.s32.totalorder %s15, 0
      %p77 = por %p75, %p76
      %p78 = scmp.ne.s32.totalorder %s70, %s72
      %p79 = scmp.eq.s32.totalorder %s20, 1
      %p80 = por %p78, %p79
      %p81 = scmp.ne.s32.totalorder %s72, %s73
      %p82 = scmp.eq.s32.totalorder %s20, 0
      %p83 = por %p81, %p82
      %p84 = scmp.ne.s32.totalorder %s72, %s73
      %p85 = scmp.eq.s32.totalorder %s21, 1
      %p86 = por %p84, %p85
      %p88 = scmp.ne.s32.totalorder %s73, %s87
      %p89 = scmp.eq.s32.totalorder %s21, 0
      %p90 = por %p88, %p89
      %s92 = sadd.s32 %s91, 1
      %p95 = scmp.eq.s32.totalorder %s15, 1
      %p96 = scmp.ne.s32.totalorder %s91, %s93
      %p97 = scmp.eq.s32.totalorder %s15, 0
      %p98 = por %p96, %p97
      %p99 = scmp.ne.s32.totalorder %s91, %s93
      %p100 = scmp.eq.s32.totalorder %s20, 1
      %p101 = por %p99, %p100
      %p102 = scmp.ne.s32.totalorder %s93, %s94
      %p103 = scmp.eq.s32.totalorder %s20, 0
      %p104 = por %p102, %p103
      %p105 = scmp.ne.s32.totalorder %s93, %s94
      %p106 = scmp.eq.s32.totalorder %s21, 1
      %p107 = por %p105, %p106
      %p109 = scmp.ne.s32.totalorder %s94, %s108
      %p110 = scmp.eq.s32.totalorder %s21, 0
      %p111 = por %p109, %p110
      %s113 = sadd.s32 %s112, 1
      %p116 = scmp.eq.s32.totalorder %s15, 1
      %p117 = scmp.ne.s32.totalorder %s112, %s114
      %p118 = scmp.eq.s32.totalorder %s15, 0
      %p119 = por %p117, %p118
      %p120 = scmp.ne.s32.totalorder %s112, %s114
      %p121 = scmp.eq.s32.totalorder %s20, 1
      %p122 = por %p120, %p121
      %p123 = scmp.ne.s32.totalorder %s114, %s115
      %p124 = scmp.eq.s32.totalorder %s20, 0
      %p125 = por %p123, %p124
      %p126 = scmp.ne.s32.totalorder %s114, %s115
      %p127 = scmp.eq.s32.totalorder %s21, 1
      %p128 = por %p126, %p127
      %p130 = scmp.ne.s32.totalorder %s115, %s129
      %p131 = scmp.eq.s32.totalorder %s21, 0
      %p132 = por %p130, %p131
      %s134 = sadd.s32 %s133, 1
      %p137 = scmp.eq.s32.totalorder %s15, 1
      %p138 = scmp.ne.s32.totalorder %s133, %s135
      %p139 = scmp.eq.s32.totalorder %s15, 0
      %p140 = por %p138, %p139
      %p141 = scmp.ne.s32.totalorder %s133, %s135
      %p142 = scmp.eq.s32.totalorder %s20, 1
      %p143 = por %p141, %p142
      %p144 = scmp.ne.s32.totalorder %s135, %s136
      %p145 = scmp.eq.s32.totalorder %s20, 0
      %p146 = por %p144, %p145
      %p147 = scmp.ne.s32.totalorder %s135, %s136
      %p148 = scmp.eq.s32.totalorder %s21, 1
      %p149 = por %p147, %p148
      %p151 = scmp.ne.s32.totalorder %s136, %s150
      %p152 = scmp.eq.s32.totalorder %s21, 0
      %p153 = por %p151, %p152
      %s155 = sadd.s32 %s154, 1
      %p158 = scmp.eq.s32.totalorder %s15, 1
      %p159 = scmp.ne.s32.totalorder %s154, %s156
      %p160 = scmp.eq.s32.totalorder %s15, 0
      %p161 = por %p159, %p160
      %p162 = scmp.ne.s32.totalorder %s154, %s156
      %p163 = scmp.eq.s32.totalorder %s20, 1
      %p164 = por %p162, %p163
      %p165 = scmp.ne.s32.totalorder %s156, %s157
      %p166 = scmp.eq.s32.totalorder %s20, 0
      %p167 = por %p165, %p166
      %p168 = scmp.ne.s32.totalorder %s156, %s157
      %p169 = scmp.eq.s32.totalorder %s21, 1
      %p170 = por %p168, %p169
      %p172 = scmp.ne.s32.totalorder %s157, %s171
      %p173 = scmp.eq.s32.totalorder %s21, 0
      %p174 = por %p172, %p173
      %s175 = ssub.s32 %s15, %s22
      %p176 = scmp.eq.s32.totalorder %s175, 0
      %s178 = sadd.s32 %s177, 1
      %s179 = scalar_select %p176, %s177, %s178
      %p182 = pneg %p176
      %p183 = scmp.eq.s32.totalorder %s15, 1
      %p184 = por %p182, %p183
      %p185 = scmp.ne.s32.totalorder %s177, %s180
      %p186 = scmp.eq.s32.totalorder %s15, 0
      %p187 = por %p185, %p186
      %p188 = scmp.ne.s32.totalorder %s177, %s180
      %p189 = scmp.eq.s32.totalorder %s20, 1
      %p190 = por %p188, %p189
      %p191 = scmp.ne.s32.totalorder %s180, %s181
      %p192 = scmp.eq.s32.totalorder %s20, 0
      %p193 = por %p191, %p192
      %p194 = scmp.ne.s32.totalorder %s180, %s181
      %p195 = scmp.eq.s32.totalorder %s21, 1
      %p196 = por %p194, %p195
      %p198 = scmp.ne.s32.totalorder %s181, %s197
      %p199 = scmp.eq.s32.totalorder %s21, 0
      %p200 = por %p198, %p199
      %p201 = scmp.le.s32.totalorder 1, %s15
      %p202 = scmp.lt.s32.totalorder %s15, 3
      %p203 = pnand %p201, %p202
      %p204 = pneg %p203
      // Predicated region
      $region9: #{tpu_custom_call.1} parent=5 // pred_check
        _
      $region10: #{tpu_custom_call.1} parent=5 // pred_check_branch
        %206 = sbr.rel (%p203) target = $region12
      $region11: #{tpu_custom_call.1} parent=5 // pred_region
        %s207 = ssub.s32 %s15, 1
        // Predicated region
        $region13: #{tpu_custom_call.1} parent=11 // pred_check
          %p208 = pneg %p62
        $region14: #{tpu_custom_call.1} parent=11 // pred_check_branch
          %210 = sbr.rel (%p208) target = $region16
        $region15: #{tpu_custom_call.1} parent=11 // pred_region
          _
        $region16: #{tpu_custom_call.1} parent=11 // pred_fallthru
          _
        // Predicated region
        $region17: #{tpu_custom_call.1} parent=11 // pred_check
          %p211 = pneg %p83
        $region18: #{tpu_custom_call.1} parent=11 // pred_check_branch
          %213 = sbr.rel (%p211) target = $region20
        $region19: #{tpu_custom_call.1} parent=11 // pred_region
          _
        $region20: #{tpu_custom_call.1} parent=11 // pred_fallthru
          _
        // Predicated region
        $region21: #{tpu_custom_call.1} parent=11 // pred_check
          %p214 = pneg %p104
        $region22: #{tpu_custom_call.1} parent=11 // pred_check_branch
          %216 = sbr.rel (%p214) target = $region24
        $region23: #{tpu_custom_call.1} parent=11 // pred_region
          _
        $region24: #{tpu_custom_call.1} parent=11 // pred_fallthru
          _
        // Predicated region
        $region25: #{tpu_custom_call.1} parent=11 // pred_check
          %p217 = pneg %p125
        $region26: #{tpu_custom_call.1} parent=11 // pred_check_branch
          %219 = sbr.rel (%p217) target = $region28
        $region27: #{tpu_custom_call.1} parent=11 // pred_region
          _
        $region28: #{tpu_custom_call.1} parent=11 // pred_fallthru
          _
        // Predicated region
        $region29: #{tpu_custom_call.1} parent=11 // pred_check
          %p220 = pneg %p146
        $region30: #{tpu_custom_call.1} parent=11 // pred_check_branch
          %222 = sbr.rel (%p220) target = $region32
        $region31: #{tpu_custom_call.1} parent=11 // pred_region
          _
        $region32: #{tpu_custom_call.1} parent=11 // pred_fallthru
          _
        // Predicated region
        $region33: #{tpu_custom_call.1} parent=11 // pred_check
          %p223 = pneg %p167
        $region34: #{tpu_custom_call.1} parent=11 // pred_check_branch
          %225 = sbr.rel (%p223) target = $region36
        $region35: #{tpu_custom_call.1} parent=11 // pred_region
          _
        $region36: #{tpu_custom_call.1} parent=11 // pred_fallthru
          _
      $region12: #{tpu_custom_call.1} parent=5 // pred_fallthru
        _
      %p226 = scmp.lt.s32.totalorder %s15, 2
      // Predicated region
      $region37: #{tpu_custom_call.1} parent=5 // pred_check
        %p227 = pneg %p226
      $region38: #{tpu_custom_call.1} parent=5 // pred_check_branch
        %229 = sbr.rel (%p227) target = $region40
      $region39: #{tpu_custom_call.1} parent=5 // pred_region
        // Predicated region
        $region41: #{tpu_custom_call.1} parent=39 // pred_check
          %p230 = pneg %p35
        $region42: #{tpu_custom_call.1} parent=39 // pred_check_branch
          %232 = sbr.rel (%p230) target = $region44
        $region43: #{tpu_custom_call.1} parent=39 // pred_region
          %s233 = smul.u32 32, %s15
          %s234 = ssub.s32 38, %s233
          %p235 = scmp.lt.s32.totalorder %s234, 32
          %s236 = scalar_select %p235, %s234, 32
          %s237 = smul.u32 8, %s236
          %p238 = scmp.lt.s32.totalorder %s233, 37
          %s239 = scalar_select %p238, %s233, 37
          %s240 = smul.addr %s239, 8
          %s241 = scalar_lea.vmem %s0, %s240
          %s242 = smul.u32 32, %s15
          %s243 = ssub.s32 38, %s242
          %p244 = scmp.lt.s32.totalorder %s243, 32
          %s245 = scalar_select %p244, %s243, 32
          %s246 = smul.u32 8, %s245
        $region44: #{tpu_custom_call.1} parent=39 // pred_fallthru
          _
      $region40: #{tpu_custom_call.1} parent=5 // pred_fallthru
        _
      %p247 = scmp.le.s32.totalorder 1, %s15
      %p248 = scmp.lt.s32.totalorder %s15, 3
      %p249 = pnand %p247, %p248
      %p250 = pneg %p249
      // Predicated region
      $region45: #{tpu_custom_call.1} parent=5 // pred_check
        _
      $region46: #{tpu_custom_call.1} parent=5 // pred_check_branch
        %252 = sbr.rel (%p249) target = $region48
      $region47: #{tpu_custom_call.1} parent=5 // pred_region
        %s253 = ssub.s32 %s15, 1
        %s254 = smul.u32 32, %s20
        %s255 = ssub.s32 38, %s254
        %p256 = scmp.lt.s32.totalorder %s255, 32
        %s257 = scalar_select %p256, %s255, 32
        %s258 = smul.u32 8, %s257
        %p259 = scmp.lt.s32.totalorder %s254, 37
        %s260 = scalar_select %p259, %s254, 37
        %s261 = smul.addr %s260, 8
        %s262 = scalar_lea.vmem %s0, %s261
        %p263 = pneg %p41
        %p264 = pneg %p38
        %p265 = pneg %p62
        %p266 = pneg %p59
        %p267 = pneg %p83
        %p268 = pneg %p80
        %p269 = pneg %p104
        %p270 = pneg %p101
        %p271 = pneg %p125
        %p272 = pneg %p122
        %p273 = pneg %p146
        %p274 = pneg %p143
        %p275 = pneg %p167
        %p276 = pneg %p164
        %p277 = pneg %p193
        %p278 = pneg %p190
        %s279 = sand.u32 %s180, 1
        %s280 = sand.u32 %s180, 1
        %s281 = smul.addr %s280, 256
        %s282 = scalar_lea.vmem [#allocation3], %s281
        %s283 = smul.u32 32, %s20
        %s284 = ssub.s32 38, %s283
        %p285 = scmp.lt.s32.totalorder %s284, 32
        %s286 = scalar_select %p285, %s284, 32
        %s287 = smul.u32 8, %s286
        %p288 = scmp.lt.s32.totalorder %s283, 37
        %s289 = scalar_select %p288, %s283, 37
        %s290 = smul.addr %s289, 8
        %s291 = scalar_lea.vmem %s0, %s290
        %s292 = smul.u32 32, %s20
        %s293 = ssub.s32 38, %s292
        %p294 = scmp.lt.s32.totalorder %s293, 32
        %s295 = scalar_select %p294, %s293, 32
        %s296 = smul.u32 8, %s295
        %s297 = smul.u32 32, %s20
        %s298 = ssub.s32 38, %s297
        %p299 = scmp.lt.s32.totalorder %s298, 32
        %s300 = scalar_select %p299, %s298, 32
        %s301 = smul.u32 8, %s300
        %v303 = vld [vmem:[%s291] sm:$0xff]
        %v304 = vld [vmem:[%s291 + $0x8] sm:$0xff]
        %v305 = vld [vmem:[%s291 + $0x10] sm:$0xff]
        %v306 = vld [vmem:[%s291 + $0x18] sm:$0xff]
        %v307 = vld [vmem:[%s291 + $0x20] sm:$0xff]
        %v308 = vld [vmem:[%s291 + $0x28] sm:$0xff]
        %v309 = vld [vmem:[%s291 + $0x30] sm:$0xff]
        %v310 = vld [vmem:[%s291 + $0x38] sm:$0xff]
        %v311 = vld [vmem:[%s291 + $0x40] sm:$0xff]
        %v312 = vld [vmem:[%s291 + $0x48] sm:$0xff]
        %v313 = vld [vmem:[%s291 + $0x50] sm:$0xff]
        %v314 = vld [vmem:[%s291 + $0x58] sm:$0xff]
        %v315 = vld [vmem:[%s291 + $0x60] sm:$0xff]
        %v316 = vld [vmem:[%s291 + $0x68] sm:$0xff]
        %v317 = vld [vmem:[%s291 + $0x70] sm:$0xff]
        %v318 = vld [vmem:[%s291 + $0x78] sm:$0xff]
        %v319 = vld [vmem:[%s291 + $0x80] sm:$0xff]
        %v320 = vld [vmem:[%s291 + $0x88] sm:$0xff]
        %v321 = vld [vmem:[%s291 + $0x90] sm:$0xff]
        %v322 = vld [vmem:[%s291 + $0x98] sm:$0xff]
        %v323 = vld [vmem:[%s291 + $0xa0] sm:$0xff]
        %v324 = vld [vmem:[%s291 + $0xa8] sm:$0xff]
        %v325 = vld [vmem:[%s291 + $0xb0] sm:$0xff]
        %v326 = vld [vmem:[%s291 + $0xb8] sm:$0xff]
        %v327 = vld [vmem:[%s291 + $0xc0] sm:$0xff]
        %v328 = vld [vmem:[%s291 + $0xc8] sm:$0xff]
        %v329 = vld [vmem:[%s291 + $0xd0] sm:$0xff]
        %v330 = vld [vmem:[%s291 + $0xd8] sm:$0xff]
        %v331 = vld [vmem:[%s291 + $0xe0] sm:$0xff]
        %v332 = vld [vmem:[%s291 + $0xe8] sm:$0xff]
        %v333 = vld [vmem:[%s291 + $0xf0] sm:$0xff]
        %v334 = vld [vmem:[%s291 + $0xf8] sm:$0xff]
        %v335 = vpack.c.bf16 %v304, %v303
        %v336 = vpack.c.bf16 %v306, %v305
        %v337 = vpack.c.bf16 %v308, %v307
        %v338 = vpack.c.bf16 %v310, %v309
        %v339 = vpack.c.bf16 %v312, %v311
        %v340 = vpack.c.bf16 %v314, %v313
        %v341 = vpack.c.bf16 %v316, %v315
        %v342 = vpack.c.bf16 %v318, %v317
        %v343 = vpack.c.bf16 %v320, %v319
        %v344 = vpack.c.bf16 %v322, %v321
        %v345 = vpack.c.bf16 %v324, %v323
        %v346 = vpack.c.bf16 %v326, %v325
        %v347 = vpack.c.bf16 %v328, %v327
        %v348 = vpack.c.bf16 %v330, %v329
        %v349 = vpack.c.bf16 %v332, %v331
        %v350 = vpack.c.bf16 %v334, %v333
        %v351 = vld [vmem:[%s1] sm:$0xf]
        %v352 = vld [vmem:[%s1 + $0x4] sm:$0xf]
        %v353 = vld [vmem:[%s1 + $0x8] sm:$0xf]
        %v354 = vld [vmem:[%s1 + $0xc] sm:$0xf]
        %v355 = vld [vmem:[%s2] sm:$0x1]
        %v357 = vperm.slane %v355, 0
        %v363 = vunpack.c.l.b16 %v351
        %v364 = vunpack.c.l.b16 %v352
        %v365 = vunpack.c.l.b16 %v353
        %v366 = vunpack.c.l.b16 %v354
        %v367 = vpack.c.b16 %v364, %v363
        %v368 = vpack.c.b16 %v366, %v365
        %vm371 = vcmask 261120
        %v373 = vsel %vm371, %v335, 0
        %v376 = vsel %vm371, %v336, 0
        %v379 = vsel %vm371, %v337, 0
        %v382 = vsel %vm371, %v338, 0
        %v385 = vsel %vm371, %v339, 0
        %v388 = vsel %vm371, %v340, 0
        %v391 = vsel %vm371, %v341, 0
        %v394 = vsel %vm371, %v342, 0
        %v397 = vsel %vm371, %v343, 0
        %v400 = vsel %vm371, %v344, 0
        %v403 = vsel %vm371, %v345, 0
        %v406 = vsel %vm371, %v346, 0
        %v409 = vsel %vm371, %v347, 0
        %v412 = vsel %vm371, %v348, 0
        %v415 = vsel %vm371, %v349, 0
        %v418 = vsel %vm371, %v350, 0
        %420 = vmatpush.bf16.msra.mxu0 0
        %421 = vmatpush.bf16.msra.mxu0 0
        %422 = vmatpush.bf16.msra.mxu0 0
        %423 = vmatpush.bf16.msra.mxu0 0
        %424 = vmatpush.bf16.msra.mxu0 0
        %425 = vmatpush.bf16.msra.mxu0 0
        %426 = vmatpush.bf16.msra.mxu0 %v368
        %427 = vmatpush.bf16.msra.mxu0 %v367
        %428 = vmatmul.bf16.gmra.mxu0 %v373
        %v429 = vpop.f32.mrf.mxu0
        %v430 = vadd.f32 %v357, %v429
        %v431 = vpop.f32.mrf.mxu0
        %v432 = vadd.f32 %v357, %v431
        %433 = vmatmul.bf16.gmra.mxu0 %v376
        %v434 = vpop.f32.mrf.mxu0
        %v435 = vadd.f32 %v357, %v434
        %v436 = vpop.f32.mrf.mxu0
        %v437 = vadd.f32 %v357, %v436
        %438 = vmatmul.bf16.gmra.mxu0 %v379
        %v439 = vpop.f32.mrf.mxu0
        %v440 = vadd.f32 %v357, %v439
        %v441 = vpop.f32.mrf.mxu0
        %v442 = vadd.f32 %v357, %v441
        %443 = vmatmul.bf16.gmra.mxu0 %v382
        %v444 = vpop.f32.mrf.mxu0
        %v445 = vadd.f32 %v357, %v444
        %v446 = vpop.f32.mrf.mxu0
        %v447 = vadd.f32 %v357, %v446
        %448 = vmatmul.bf16.gmra.mxu0 %v385
        %v449 = vpop.f32.mrf.mxu0
        %v450 = vadd.f32 %v357, %v449
        %v451 = vpop.f32.mrf.mxu0
        %v452 = vadd.f32 %v357, %v451
        %453 = vmatmul.bf16.gmra.mxu0 %v388
        %v454 = vpop.f32.mrf.mxu0
        %v455 = vadd.f32 %v357, %v454
        %v456 = vpop.f32.mrf.mxu0
        %v457 = vadd.f32 %v357, %v456
        %458 = vmatmul.bf16.gmra.mxu0 %v391
        %v459 = vpop.f32.mrf.mxu0
        %v460 = vadd.f32 %v357, %v459
        %v461 = vpop.f32.mrf.mxu0
        %v462 = vadd.f32 %v357, %v461
        %463 = vmatmul.bf16.gmra.mxu0 %v394
        %v464 = vpop.f32.mrf.mxu0
        %v465 = vadd.f32 %v357, %v464
        %v466 = vpop.f32.mrf.mxu0
        %v467 = vadd.f32 %v357, %v466
        %468 = vmatmul.bf16.gmra.mxu0 %v397
        %v469 = vpop.f32.mrf.mxu0
        %v470 = vadd.f32 %v357, %v469
        %v471 = vpop.f32.mrf.mxu0
        %v472 = vadd.f32 %v357, %v471
        %473 = vmatmul.bf16.gmra.mxu0 %v400
        %v474 = vpop.f32.mrf.mxu0
        %v475 = vadd.f32 %v357, %v474
        %v476 = vpop.f32.mrf.mxu0
        %v477 = vadd.f32 %v357, %v476
        %478 = vmatmul.bf16.gmra.mxu0 %v403
        %v479 = vpop.f32.mrf.mxu0
        %v480 = vadd.f32 %v357, %v479
        %v481 = vpop.f32.mrf.mxu0
        %v482 = vadd.f32 %v357, %v481
        %483 = vmatmul.bf16.gmra.mxu0 %v406
        %v484 = vpop.f32.mrf.mxu0
        %v485 = vadd.f32 %v357, %v484
        %v486 = vpop.f32.mrf.mxu0
        %v487 = vadd.f32 %v357, %v486
        %488 = vmatmul.bf16.gmra.mxu0 %v409
        %v489 = vpop.f32.mrf.mxu0
        %v490 = vadd.f32 %v357, %v489
        %v491 = vpop.f32.mrf.mxu0
        %v492 = vadd.f32 %v357, %v491
        %493 = vmatmul.bf16.gmra.mxu0 %v412
        %v494 = vpop.f32.mrf.mxu0
        %v495 = vadd.f32 %v357, %v494
        %v496 = vpop.f32.mrf.mxu0
        %v497 = vadd.f32 %v357, %v496
        %498 = vmatmul.bf16.gmra.mxu0 %v415
        %v499 = vpop.f32.mrf.mxu0
        %v500 = vadd.f32 %v357, %v499
        %v501 = vpop.f32.mrf.mxu0
        %v502 = vadd.f32 %v357, %v501
        %503 = vmatmul.bf16.gmra.mxu0 %v418
        %v504 = vpop.f32.mrf.mxu0
        %v505 = vadd.f32 %v357, %v504
        %v506 = vpop.f32.mrf.mxu0
        %v507 = vadd.f32 %v357, %v506
        %508 = vdwg.mxu0
        %v509 = vmul.f32 %v430, 0.2
        %v510 = vmul.f32 %v432, 0.2
        %v511 = vmul.f32 %v435, 0.2
        %v512 = vmul.f32 %v437, 0.2
        %v513 = vmul.f32 %v440, 0.2
        %v514 = vmul.f32 %v442, 0.2
        %v515 = vmul.f32 %v445, 0.2
        %v516 = vmul.f32 %v447, 0.2
        %v517 = vmul.f32 %v450, 0.2
        %v518 = vmul.f32 %v452, 0.2
        %v519 = vmul.f32 %v455, 0.2
        %v520 = vmul.f32 %v457, 0.2
        %v521 = vmul.f32 %v460, 0.2
        %v522 = vmul.f32 %v462, 0.2
        %v523 = vmul.f32 %v465, 0.2
        %v524 = vmul.f32 %v467, 0.2
        %v525 = vmul.f32 %v470, 0.2
        %v526 = vmul.f32 %v472, 0.2
        %v527 = vmul.f32 %v475, 0.2
        %v528 = vmul.f32 %v477, 0.2
        %v529 = vmul.f32 %v480, 0.2
        %v530 = vmul.f32 %v482, 0.2
        %v531 = vmul.f32 %v485, 0.2
        %v532 = vmul.f32 %v487, 0.2
        %v533 = vmul.f32 %v490, 0.2
        %v534 = vmul.f32 %v492, 0.2
        %v535 = vmul.f32 %v495, 0.2
        %v536 = vmul.f32 %v497, 0.2
        %v537 = vmul.f32 %v500, 0.2
        %v538 = vmul.f32 %v502, 0.2
        %v539 = vmul.f32 %v505, 0.2
        %v540 = vmul.f32 %v507, 0.2
        %v541 = vmax.f32 %v430, %v509
        %v542 = vmax.f32 %v432, %v510
        %v543 = vmax.f32 %v435, %v511
        %v544 = vmax.f32 %v437, %v512
        %v545 = vmax.f32 %v440, %v513
        %v546 = vmax.f32 %v442, %v514
        %v547 = vmax.f32 %v445, %v515
        %v548 = vmax.f32 %v447, %v516
        %v549 = vmax.f32 %v450, %v517
        %v550 = vmax.f32 %v452, %v518
        %v551 = vmax.f32 %v455, %v519
        %v552 = vmax.f32 %v457, %v520
        %v553 = vmax.f32 %v460, %v521
        %v554 = vmax.f32 %v462, %v522
        %v555 = vmax.f32 %v465, %v523
        %v556 = vmax.f32 %v467, %v524
        %v557 = vmax.f32 %v470, %v525
        %v558 = vmax.f32 %v472, %v526
        %v559 = vmax.f32 %v475, %v527
        %v560 = vmax.f32 %v477, %v528
        %v561 = vmax.f32 %v480, %v529
        %v562 = vmax.f32 %v482, %v530
        %v563 = vmax.f32 %v485, %v531
        %v564 = vmax.f32 %v487, %v532
        %v565 = vmax.f32 %v490, %v533
        %v566 = vmax.f32 %v492, %v534
        %v567 = vmax.f32 %v495, %v535
        %v568 = vmax.f32 %v497, %v536
        %v569 = vmax.f32 %v500, %v537
        %v570 = vmax.f32 %v502, %v538
        %v571 = vmax.f32 %v505, %v539
        %v572 = vmax.f32 %v507, %v540
        %v573 = vpack.c.bf16 %v542, %v541
        %v574 = vpack.c.bf16 %v544, %v543
        %v575 = vpack.c.bf16 %v546, %v545
        %v576 = vpack.c.bf16 %v548, %v547
        %v577 = vpack.c.bf16 %v550, %v549
        %v578 = vpack.c.bf16 %v552, %v551
        %v579 = vpack.c.bf16 %v554, %v553
        %v580 = vpack.c.bf16 %v556, %v555
        %v581 = vpack.c.bf16 %v558, %v557
        %v582 = vpack.c.bf16 %v560, %v559
        %v583 = vpack.c.bf16 %v562, %v561
        %v584 = vpack.c.bf16 %v564, %v563
        %v585 = vpack.c.bf16 %v566, %v565
        %v586 = vpack.c.bf16 %v568, %v567
        %v587 = vpack.c.bf16 %v570, %v569
        %v588 = vpack.c.bf16 %v572, %v571
        %v589 = vld [vmem:[%s3] sm:$0xf]
        %v590 = vld [vmem:[%s3 + $0x4] sm:$0xf]
        %v591 = vld [vmem:[%s3 + $0x8] sm:$0xf]
        %v592 = vld [vmem:[%s3 + $0xc] sm:$0xf]
        %v593 = vld [vmem:[%s3 + $0x10] sm:$0xf]
        %v594 = vld [vmem:[%s3 + $0x14] sm:$0xf]
        %v595 = vld [vmem:[%s3 + $0x18] sm:$0xf]
        %v596 = vld [vmem:[%s3 + $0x1c] sm:$0xf]
        %v597 = vld [vmem:[%s3 + $0x20] sm:$0xf]
        %v598 = vld [vmem:[%s3 + $0x24] sm:$0xf]
        %v599 = vld [vmem:[%s3 + $0x28] sm:$0xf]
        %v600 = vld [vmem:[%s3 + $0x2c] sm:$0xf]
        %v601 = vld [vmem:[%s3 + $0x30] sm:$0xf]
        %v602 = vld [vmem:[%s3 + $0x34] sm:$0xf]
        %v603 = vld [vmem:[%s3 + $0x38] sm:$0xf]
        %v604 = vld [vmem:[%s3 + $0x3c] sm:$0xf]
        %v605 = vld [vmem:[%s4] sm:$0x1]
        %v607 = vperm.slane %v605, 0
        %v625 = vunpack.c.l.b16 %v589
        %v626 = vunpack.c.l.b16 %v590
        %v627 = vunpack.c.l.b16 %v591
        %v628 = vunpack.c.l.b16 %v592
        %v629 = vunpack.c.l.b16 %v593
        %v630 = vunpack.c.l.b16 %v594
        %v631 = vunpack.c.l.b16 %v595
        %v632 = vunpack.c.l.b16 %v596
        %v633 = vunpack.c.l.b16 %v597
        %v634 = vunpack.c.l.b16 %v598
        %v635 = vunpack.c.l.b16 %v599
        %v636 = vunpack.c.l.b16 %v600
        %v637 = vunpack.c.l.b16 %v601
        %v638 = vunpack.c.l.b16 %v602
        %v639 = vunpack.c.l.b16 %v603
        %v640 = vunpack.c.l.b16 %v604
        %v641 = vpack.c.b16 %v626, %v625
        %v642 = vpack.c.b16 %v628, %v627
        %v643 = vpack.c.b16 %v630, %v629
        %v644 = vpack.c.b16 %v632, %v631
        %v645 = vpack.c.b16 %v634, %v633
        %v646 = vpack.c.b16 %v636, %v635
        %v647 = vpack.c.b16 %v638, %v637
        %v648 = vpack.c.b16 %v640, %v639
        %657 = vmatpush.bf16.msra.mxu0 %v648
        %658 = vmatpush.bf16.msra.mxu0 %v647
        %659 = vmatpush.bf16.msra.mxu0 %v646
        %660 = vmatpush.bf16.msra.mxu0 %v645
        %661 = vmatpush.bf16.msra.mxu0 %v644
        %662 = vmatpush.bf16.msra.mxu0 %v643
        %663 = vmatpush.bf16.msra.mxu0 %v642
        %664 = vmatpush.bf16.msra.mxu0 %v641
        %665 = vmatmul.bf16.gmra.mxu0 %v573
        %v666 = vpop.f32.mrf.mxu0
        %v667 = vadd.f32 %v607, %v666
        %v668 = vpop.f32.mrf.mxu0
        %v669 = vadd.f32 %v607, %v668
        %670 = vmatmul.bf16.gmra.mxu0 %v574
        %v671 = vpop.f32.mrf.mxu0
        %v672 = vadd.f32 %v607, %v671
        %v673 = vpop.f32.mrf.mxu0
        %v674 = vadd.f32 %v607, %v673
        %675 = vmatmul.bf16.gmra.mxu0 %v575
        %v676 = vpop.f32.mrf.mxu0
        %v677 = vadd.f32 %v607, %v676
        %v678 = vpop.f32.mrf.mxu0
        %v679 = vadd.f32 %v607, %v678
        %680 = vmatmul.bf16.gmra.mxu0 %v576
        %v681 = vpop.f32.mrf.mxu0
        %v682 = vadd.f32 %v607, %v681
        %v683 = vpop.f32.mrf.mxu0
        %v684 = vadd.f32 %v607, %v683
        %685 = vmatmul.bf16.gmra.mxu0 %v577
        %v686 = vpop.f32.mrf.mxu0
        %v687 = vadd.f32 %v607, %v686
        %v688 = vpop.f32.mrf.mxu0
        %v689 = vadd.f32 %v607, %v688
        %690 = vmatmul.bf16.gmra.mxu0 %v578
        %v691 = vpop.f32.mrf.mxu0
        %v692 = vadd.f32 %v607, %v691
        %v693 = vpop.f32.mrf.mxu0
        %v694 = vadd.f32 %v607, %v693
        %695 = vmatmul.bf16.gmra.mxu0 %v579
        %v696 = vpop.f32.mrf.mxu0
        %v697 = vadd.f32 %v607, %v696
        %v698 = vpop.f32.mrf.mxu0
        %v699 = vadd.f32 %v607, %v698
        %700 = vmatmul.bf16.gmra.mxu0 %v580
        %v701 = vpop.f32.mrf.mxu0
        %v702 = vadd.f32 %v607, %v701
        %v703 = vpop.f32.mrf.mxu0
        %v704 = vadd.f32 %v607, %v703
        %705 = vmatmul.bf16.gmra.mxu0 %v581
        %v706 = vpop.f32.mrf.mxu0
        %v707 = vadd.f32 %v607, %v706
        %v708 = vpop.f32.mrf.mxu0
        %v709 = vadd.f32 %v607, %v708
        %710 = vmatmul.bf16.gmra.mxu0 %v582
        %v711 = vpop.f32.mrf.mxu0
        %v712 = vadd.f32 %v607, %v711
        %v713 = vpop.f32.mrf.mxu0
        %v714 = vadd.f32 %v607, %v713
        %715 = vmatmul.bf16.gmra.mxu0 %v583
        %v716 = vpop.f32.mrf.mxu0
        %v717 = vadd.f32 %v607, %v716
        %v718 = vpop.f32.mrf.mxu0
        %v719 = vadd.f32 %v607, %v718
        %720 = vmatmul.bf16.gmra.mxu0 %v584
        %v721 = vpop.f32.mrf.mxu0
        %v722 = vadd.f32 %v607, %v721
        %v723 = vpop.f32.mrf.mxu0
        %v724 = vadd.f32 %v607, %v723
        %725 = vmatmul.bf16.gmra.mxu0 %v585
        %v726 = vpop.f32.mrf.mxu0
        %v727 = vadd.f32 %v607, %v726
        %v728 = vpop.f32.mrf.mxu0
        %v729 = vadd.f32 %v607, %v728
        %730 = vmatmul.bf16.gmra.mxu0 %v586
        %v731 = vpop.f32.mrf.mxu0
        %v732 = vadd.f32 %v607, %v731
        %v733 = vpop.f32.mrf.mxu0
        %v734 = vadd.f32 %v607, %v733
        %735 = vmatmul.bf16.gmra.mxu0 %v587
        %v736 = vpop.f32.mrf.mxu0
        %v737 = vadd.f32 %v607, %v736
        %v738 = vpop.f32.mrf.mxu0
        %v739 = vadd.f32 %v607, %v738
        %740 = vmatmul.bf16.gmra.mxu0 %v588
        %v741 = vpop.f32.mrf.mxu0
        %v742 = vadd.f32 %v607, %v741
        %v743 = vpop.f32.mrf.mxu0
        %v744 = vadd.f32 %v607, %v743
        %745 = vdwg.mxu0
        %v746 = vmul.f32 %v667, 0.2
        %v747 = vmul.f32 %v669, 0.2
        %v748 = vmul.f32 %v672, 0.2
        %v749 = vmul.f32 %v674, 0.2
        %v750 = vmul.f32 %v677, 0.2
        %v751 = vmul.f32 %v679, 0.2
        %v752 = vmul.f32 %v682, 0.2
        %v753 = vmul.f32 %v684, 0.2
        %v754 = vmul.f32 %v687, 0.2
        %v755 = vmul.f32 %v689, 0.2
        %v756 = vmul.f32 %v692, 0.2
        %v757 = vmul.f32 %v694, 0.2
        %v758 = vmul.f32 %v697, 0.2
        %v759 = vmul.f32 %v699, 0.2
        %v760 = vmul.f32 %v702, 0.2
        %v761 = vmul.f32 %v704, 0.2
        %v762 = vmul.f32 %v707, 0.2
        %v763 = vmul.f32 %v709, 0.2
        %v764 = vmul.f32 %v712, 0.2
        %v765 = vmul.f32 %v714, 0.2
        %v766 = vmul.f32 %v717, 0.2
        %v767 = vmul.f32 %v719, 0.2
        %v768 = vmul.f32 %v722, 0.2
        %v769 = vmul.f32 %v724, 0.2
        %v770 = vmul.f32 %v727, 0.2
        %v771 = vmul.f32 %v729, 0.2
        %v772 = vmul.f32 %v732, 0.2
        %v773 = vmul.f32 %v734, 0.2
        %v774 = vmul.f32 %v737, 0.2
        %v775 = vmul.f32 %v739, 0.2
        %v776 = vmul.f32 %v742, 0.2
        %v777 = vmul.f32 %v744, 0.2
        %v778 = vmax.f32 %v667, %v746
        %v779 = vmax.f32 %v669, %v747
        %v780 = vmax.f32 %v672, %v748
        %v781 = vmax.f32 %v674, %v749
        %v782 = vmax.f32 %v677, %v750
        %v783 = vmax.f32 %v679, %v751
        %v784 = vmax.f32 %v682, %v752
        %v785 = vmax.f32 %v684, %v753
        %v786 = vmax.f32 %v687, %v754
        %v787 = vmax.f32 %v689, %v755
        %v788 = vmax.f32 %v692, %v756
        %v789 = vmax.f32 %v694, %v757
        %v790 = vmax.f32 %v697, %v758
        %v791 = vmax.f32 %v699, %v759
        %v792 = vmax.f32 %v702, %v760
        %v793 = vmax.f32 %v704, %v761
        %v794 = vmax.f32 %v707, %v762
        %v795 = vmax.f32 %v709, %v763
        %v796 = vmax.f32 %v712, %v764
        %v797 = vmax.f32 %v714, %v765
        %v798 = vmax.f32 %v717, %v766
        %v799 = vmax.f32 %v719, %v767
        %v800 = vmax.f32 %v722, %v768
        %v801 = vmax.f32 %v724, %v769
        %v802 = vmax.f32 %v727, %v770
        %v803 = vmax.f32 %v729, %v771
        %v804 = vmax.f32 %v732, %v772
        %v805 = vmax.f32 %v734, %v773
        %v806 = vmax.f32 %v737, %v774
        %v807 = vmax.f32 %v739, %v775
        %v808 = vmax.f32 %v742, %v776
        %v809 = vmax.f32 %v744, %v777
        %v810 = vpack.c.bf16 %v779, %v778
        %v811 = vpack.c.bf16 %v781, %v780
        %v812 = vpack.c.bf16 %v783, %v782
        %v813 = vpack.c.bf16 %v785, %v784
        %v814 = vpack.c.bf16 %v787, %v786
        %v815 = vpack.c.bf16 %v789, %v788
        %v816 = vpack.c.bf16 %v791, %v790
        %v817 = vpack.c.bf16 %v793, %v792
        %v818 = vpack.c.bf16 %v795, %v794
        %v819 = vpack.c.bf16 %v797, %v796
        %v820 = vpack.c.bf16 %v799, %v798
        %v821 = vpack.c.bf16 %v801, %v800
        %v822 = vpack.c.bf16 %v803, %v802
        %v823 = vpack.c.bf16 %v805, %v804
        %v824 = vpack.c.bf16 %v807, %v806
        %v825 = vpack.c.bf16 %v809, %v808
        %v826 = vld [vmem:[%s5] sm:$0xf]
        %v827 = vld [vmem:[%s5 + $0x4] sm:$0xf]
        %v828 = vld [vmem:[%s5 + $0x8] sm:$0xf]
        %v829 = vld [vmem:[%s5 + $0xc] sm:$0xf]
        %v830 = vld [vmem:[%s5 + $0x10] sm:$0xf]
        %v831 = vld [vmem:[%s5 + $0x14] sm:$0xf]
        %v832 = vld [vmem:[%s5 + $0x18] sm:$0xf]
        %v833 = vld [vmem:[%s5 + $0x1c] sm:$0xf]
        %v834 = vld [vmem:[%s5 + $0x20] sm:$0xf]
        %v835 = vld [vmem:[%s5 + $0x24] sm:$0xf]
        %v836 = vld [vmem:[%s5 + $0x28] sm:$0xf]
        %v837 = vld [vmem:[%s5 + $0x2c] sm:$0xf]
        %v838 = vld [vmem:[%s5 + $0x30] sm:$0xf]
        %v839 = vld [vmem:[%s5 + $0x34] sm:$0xf]
        %v840 = vld [vmem:[%s5 + $0x38] sm:$0xf]
        %v841 = vld [vmem:[%s5 + $0x3c] sm:$0xf]
        %v842 = vld [vmem:[#allocation2] sm:$0x1]
        %v844 = vperm.slane %v842, 0
        %v862 = vunpack.c.l.b16 %v826
        %v863 = vunpack.c.l.b16 %v827
        %v864 = vunpack.c.l.b16 %v828
        %v865 = vunpack.c.l.b16 %v829
        %v866 = vunpack.c.l.b16 %v830
        %v867 = vunpack.c.l.b16 %v831
        %v868 = vunpack.c.l.b16 %v832
        %v869 = vunpack.c.l.b16 %v833
        %v870 = vunpack.c.l.b16 %v834
        %v871 = vunpack.c.l.b16 %v835
        %v872 = vunpack.c.l.b16 %v836
        %v873 = vunpack.c.l.b16 %v837
        %v874 = vunpack.c.l.b16 %v838
        %v875 = vunpack.c.l.b16 %v839
        %v876 = vunpack.c.l.b16 %v840
        %v877 = vunpack.c.l.b16 %v841
        %v878 = vpack.c.b16 %v863, %v862
        %v879 = vpack.c.b16 %v865, %v864
        %v880 = vpack.c.b16 %v867, %v866
        %v881 = vpack.c.b16 %v869, %v868
        %v882 = vpack.c.b16 %v871, %v870
        %v883 = vpack.c.b16 %v873, %v872
        %v884 = vpack.c.b16 %v875, %v874
        %v885 = vpack.c.b16 %v877, %v876
        %894 = vmatpush.bf16.msra.mxu0 %v885
        %895 = vmatpush.bf16.msra.mxu0 %v884
        %896 = vmatpush.bf16.msra.mxu0 %v883
        %897 = vmatpush.bf16.msra.mxu0 %v882
        %898 = vmatpush.bf16.msra.mxu0 %v881
        %899 = vmatpush.bf16.msra.mxu0 %v880
        %900 = vmatpush.bf16.msra.mxu0 %v879
        %901 = vmatpush.bf16.msra.mxu0 %v878
        %902 = vmatmul.bf16.gmra.mxu0 %v810
        %v903 = vpop.f32.mrf.mxu0
        %v904 = vadd.f32 %v844, %v903
        %v905 = vpop.f32.mrf.mxu0
        %v906 = vadd.f32 %v844, %v905
        %907 = vmatmul.bf16.gmra.mxu0 %v811
        %v908 = vpop.f32.mrf.mxu0
        %v909 = vadd.f32 %v844, %v908
        %v910 = vpop.f32.mrf.mxu0
        %v911 = vadd.f32 %v844, %v910
        %912 = vmatmul.bf16.gmra.mxu0 %v812
        %v913 = vpop.f32.mrf.mxu0
        %v914 = vadd.f32 %v844, %v913
        %v915 = vpop.f32.mrf.mxu0
        %v916 = vadd.f32 %v844, %v915
        %917 = vmatmul.bf16.gmra.mxu0 %v813
        %v918 = vpop.f32.mrf.mxu0
        %v919 = vadd.f32 %v844, %v918
        %v920 = vpop.f32.mrf.mxu0
        %v921 = vadd.f32 %v844, %v920
        %922 = vmatmul.bf16.gmra.mxu0 %v814
        %v923 = vpop.f32.mrf.mxu0
        %v924 = vadd.f32 %v844, %v923
        %v925 = vpop.f32.mrf.mxu0
        %v926 = vadd.f32 %v844, %v925
        %927 = vmatmul.bf16.gmra.mxu0 %v815
        %v928 = vpop.f32.mrf.mxu0
        %v929 = vadd.f32 %v844, %v928
        %v930 = vpop.f32.mrf.mxu0
        %v931 = vadd.f32 %v844, %v930
        %932 = vmatmul.bf16.gmra.mxu0 %v816
        %v933 = vpop.f32.mrf.mxu0
        %v934 = vadd.f32 %v844, %v933
        %v935 = vpop.f32.mrf.mxu0
        %v936 = vadd.f32 %v844, %v935
        %937 = vmatmul.bf16.gmra.mxu0 %v817
        %v938 = vpop.f32.mrf.mxu0
        %v939 = vadd.f32 %v844, %v938
        %v940 = vpop.f32.mrf.mxu0
        %v941 = vadd.f32 %v844, %v940
        %942 = vmatmul.bf16.gmra.mxu0 %v818
        %v943 = vpop.f32.mrf.mxu0
        %v944 = vadd.f32 %v844, %v943
        %v945 = vpop.f32.mrf.mxu0
        %v946 = vadd.f32 %v844, %v945
        %947 = vmatmul.bf16.gmra.mxu0 %v819
        %v948 = vpop.f32.mrf.mxu0
        %v949 = vadd.f32 %v844, %v948
        %v950 = vpop.f32.mrf.mxu0
        %v951 = vadd.f32 %v844, %v950
        %952 = vmatmul.bf16.gmra.mxu0 %v820
        %v953 = vpop.f32.mrf.mxu0
        %v954 = vadd.f32 %v844, %v953
        %v955 = vpop.f32.mrf.mxu0
        %v956 = vadd.f32 %v844, %v955
        %957 = vmatmul.bf16.gmra.mxu0 %v821
        %v958 = vpop.f32.mrf.mxu0
        %v959 = vadd.f32 %v844, %v958
        %v960 = vpop.f32.mrf.mxu0
        %v961 = vadd.f32 %v844, %v960
        %962 = vmatmul.bf16.gmra.mxu0 %v822
        %v963 = vpop.f32.mrf.mxu0
        %v964 = vadd.f32 %v844, %v963
        %v965 = vpop.f32.mrf.mxu0
        %v966 = vadd.f32 %v844, %v965
        %967 = vmatmul.bf16.gmra.mxu0 %v823
        %v968 = vpop.f32.mrf.mxu0
        %v969 = vadd.f32 %v844, %v968
        %v970 = vpop.f32.mrf.mxu0
        %v971 = vadd.f32 %v844, %v970
        %972 = vmatmul.bf16.gmra.mxu0 %v824
        %v973 = vpop.f32.mrf.mxu0
        %v974 = vadd.f32 %v844, %v973
        %v975 = vpop.f32.mrf.mxu0
        %v976 = vadd.f32 %v844, %v975
        %977 = vmatmul.bf16.gmra.mxu0 %v825
        %v978 = vpop.f32.mrf.mxu0
        %v979 = vadd.f32 %v844, %v978
        %v980 = vpop.f32.mrf.mxu0
        %v981 = vadd.f32 %v844, %v980
        %982 = vdwg.mxu0
        %v983 = vxor.u32 %v904, 2147483648
        %v984 = vxor.u32 %v906, 2147483648
        %v985 = vxor.u32 %v909, 2147483648
        %v986 = vxor.u32 %v911, 2147483648
        %v987 = vxor.u32 %v914, 2147483648
        %v988 = vxor.u32 %v916, 2147483648
        %v989 = vxor.u32 %v919, 2147483648
        %v990 = vxor.u32 %v921, 2147483648
        %v991 = vxor.u32 %v924, 2147483648
        %v992 = vxor.u32 %v926, 2147483648
        %v993 = vxor.u32 %v929, 2147483648
        %v994 = vxor.u32 %v931, 2147483648
        %v995 = vxor.u32 %v934, 2147483648
        %v996 = vxor.u32 %v936, 2147483648
        %v997 = vxor.u32 %v939, 2147483648
        %v998 = vxor.u32 %v941, 2147483648
        %v999 = vxor.u32 %v944, 2147483648
        %v1000 = vxor.u32 %v946, 2147483648
        %v1001 = vxor.u32 %v949, 2147483648
        %v1002 = vxor.u32 %v951, 2147483648
        %v1003 = vxor.u32 %v954, 2147483648
        %v1004 = vxor.u32 %v956, 2147483648
        %v1005 = vxor.u32 %v959, 2147483648
        %v1006 = vxor.u32 %v961, 2147483648
        %v1007 = vxor.u32 %v964, 2147483648
        %v1008 = vxor.u32 %v966, 2147483648
        %v1009 = vxor.u32 %v969, 2147483648
        %v1010 = vxor.u32 %v971, 2147483648
        %v1011 = vxor.u32 %v974, 2147483648
        %v1012 = vxor.u32 %v976, 2147483648
        %v1013 = vxor.u32 %v979, 2147483648
        %v1014 = vxor.u32 %v981, 2147483648
        %v1015 = vmul.f32 %v983, 1.442695
        %v1016 = vpow.pop %v1015
        %v1017 = vmul.f32 %v984, 1.442695
        %v1018 = vpow.pop %v1017
        %v1019 = vmul.f32 %v985, 1.442695
        %v1020 = vpow.pop %v1019
        %v1021 = vmul.f32 %v986, 1.442695
        %v1022 = vpow.pop %v1021
        %v1023 = vmul.f32 %v987, 1.442695
        %v1024 = vpow.pop %v1023
        %v1025 = vmul.f32 %v988, 1.442695
        %v1026 = vpow.pop %v1025
        %v1027 = vmul.f32 %v989, 1.442695
        %v1028 = vpow.pop %v1027
        %v1029 = vmul.f32 %v990, 1.442695
        %v1030 = vpow.pop %v1029
        %v1031 = vmul.f32 %v991, 1.442695
        %v1032 = vpow.pop %v1031
        %v1033 = vmul.f32 %v992, 1.442695
        %v1034 = vpow.pop %v1033
        %v1035 = vmul.f32 %v993, 1.442695
        %v1036 = vpow.pop %v1035
        %v1037 = vmul.f32 %v994, 1.442695
        %v1038 = vpow.pop %v1037
        %v1039 = vmul.f32 %v995, 1.442695
        %v1040 = vpow.pop %v1039
        %v1041 = vmul.f32 %v996, 1.442695
        %v1042 = vpow.pop %v1041
        %v1043 = vmul.f32 %v997, 1.442695
        %v1044 = vpow.pop %v1043
        %v1045 = vmul.f32 %v998, 1.442695
        %v1046 = vpow.pop %v1045
        %v1047 = vmul.f32 %v999, 1.442695
        %v1048 = vpow.pop %v1047
        %v1049 = vmul.f32 %v1000, 1.442695
        %v1050 = vpow.pop %v1049
        %v1051 = vmul.f32 %v1001, 1.442695
        %v1052 = vpow.pop %v1051
        %v1053 = vmul.f32 %v1002, 1.442695
        %v1054 = vpow.pop %v1053
        %v1055 = vmul.f32 %v1003, 1.442695
        %v1056 = vpow.pop %v1055
        %v1057 = vmul.f32 %v1004, 1.442695
        %v1058 = vpow.pop %v1057
        %v1059 = vmul.f32 %v1005, 1.442695
        %v1060 = vpow.pop %v1059
        %v1061 = vmul.f32 %v1006, 1.442695
        %v1062 = vpow.pop %v1061
        %v1063 = vmul.f32 %v1007, 1.442695
        %v1064 = vpow.pop %v1063
        %v1065 = vmul.f32 %v1008, 1.442695
        %v1066 = vpow.pop %v1065
        %v1067 = vmul.f32 %v1009, 1.442695
        %v1068 = vpow.pop %v1067
        %v1069 = vmul.f32 %v1010, 1.442695
        %v1070 = vpow.pop %v1069
        %v1071 = vmul.f32 %v1011, 1.442695
        %v1072 = vpow.pop %v1071
        %v1073 = vmul.f32 %v1012, 1.442695
        %v1074 = vpow.pop %v1073
        %v1075 = vmul.f32 %v1013, 1.442695
        %v1076 = vpow.pop %v1075
        %v1077 = vmul.f32 %v1014, 1.442695
        %v1078 = vpow.pop %v1077
        %v1079 = vadd.f32 %v1016, 1.0
        %v1080 = vadd.f32 %v1018, 1.0
        %v1081 = vadd.f32 %v1020, 1.0
        %v1082 = vadd.f32 %v1022, 1.0
        %v1083 = vadd.f32 %v1024, 1.0
        %v1084 = vadd.f32 %v1026, 1.0
        %v1085 = vadd.f32 %v1028, 1.0
        %v1086 = vadd.f32 %v1030, 1.0
        %v1087 = vadd.f32 %v1032, 1.0
        %v1088 = vadd.f32 %v1034, 1.0
        %v1089 = vadd.f32 %v1036, 1.0
        %v1090 = vadd.f32 %v1038, 1.0
        %v1091 = vadd.f32 %v1040, 1.0
        %v1092 = vadd.f32 %v1042, 1.0
        %v1093 = vadd.f32 %v1044, 1.0
        %v1094 = vadd.f32 %v1046, 1.0
        %v1095 = vadd.f32 %v1048, 1.0
        %v1096 = vadd.f32 %v1050, 1.0
        %v1097 = vadd.f32 %v1052, 1.0
        %v1098 = vadd.f32 %v1054, 1.0
        %v1099 = vadd.f32 %v1056, 1.0
        %v1100 = vadd.f32 %v1058, 1.0
        %v1101 = vadd.f32 %v1060, 1.0
        %v1102 = vadd.f32 %v1062, 1.0
        %v1103 = vadd.f32 %v1064, 1.0
        %v1104 = vadd.f32 %v1066, 1.0
        %v1105 = vadd.f32 %v1068, 1.0
        %v1106 = vadd.f32 %v1070, 1.0
        %v1107 = vadd.f32 %v1072, 1.0
        %v1108 = vadd.f32 %v1074, 1.0
        %v1109 = vadd.f32 %v1076, 1.0
        %v1110 = vadd.f32 %v1078, 1.0
        %v1111 = vrcp.pop %v1079
        %v1112 = vmul.f32 %v1079, %v1111
        %v1113 = vsub.f32 1.0, %v1112
        %v1114 = vmul.f32 %v1111, %v1113
        %v1115 = vadd.f32 %v1111, %v1114
        %vm1116 = vweird.f32 %v1079
        %vm1117 = vweird.f32 %v1111
        %vm1118 = vmor %vm1116, %vm1117
        %v1119 = vsel %vm1118, %v1111, %v1115
        %v1120 = vand.u32 2147483647, %v1079
        %vm1121 = vcmp.eq.f32.partialorder %v1120, 8.507059e+37
        %v1122 = vand.u32 %v1079, 2147483648
        %v1123 = vor.u32 1.1754944e-38, %v1122
        %v1124 = vsel %vm1121, %v1123, %v1119
        %v1125 = vmul.f32 1.0, %v1124
        %v1126 = vrcp.pop %v1080
        %v1127 = vmul.f32 %v1080, %v1126
        %v1128 = vsub.f32 1.0, %v1127
        %v1129 = vmul.f32 %v1126, %v1128
        %v1130 = vadd.f32 %v1126, %v1129
        %vm1131 = vweird.f32 %v1080
        %vm1132 = vweird.f32 %v1126
        %vm1133 = vmor %vm1131, %vm1132
        %v1134 = vsel %vm1133, %v1126, %v1130
        %v1135 = vand.u32 2147483647, %v1080
        %vm1136 = vcmp.eq.f32.partialorder %v1135, 8.507059e+37
        %v1137 = vand.u32 %v1080, 2147483648
        %v1138 = vor.u32 1.1754944e-38, %v1137
        %v1139 = vsel %vm1136, %v1138, %v1134
        %v1140 = vmul.f32 1.0, %v1139
        %v1141 = vrcp.pop %v1081
        %v1142 = vmul.f32 %v1081, %v1141
        %v1143 = vsub.f32 1.0, %v1142
        %v1144 = vmul.f32 %v1141, %v1143
        %v1145 = vadd.f32 %v1141, %v1144
        %vm1146 = vweird.f32 %v1081
        %vm1147 = vweird.f32 %v1141
        %vm1148 = vmor %vm1146, %vm1147
        %v1149 = vsel %vm1148, %v1141, %v1145
        %v1150 = vand.u32 2147483647, %v1081
        %vm1151 = vcmp.eq.f32.partialorder %v1150, 8.507059e+37
        %v1152 = vand.u32 %v1081, 2147483648
        %v1153 = vor.u32 1.1754944e-38, %v1152
        %v1154 = vsel %vm1151, %v1153, %v1149
        %v1155 = vmul.f32 1.0, %v1154
        %v1156 = vrcp.pop %v1082
        %v1157 = vmul.f32 %v1082, %v1156
        %v1158 = vsub.f32 1.0, %v1157
        %v1159 = vmul.f32 %v1156, %v1158
        %v1160 = vadd.f32 %v1156, %v1159
        %vm1161 = vweird.f32 %v1082
        %vm1162 = vweird.f32 %v1156
        %vm1163 = vmor %vm1161, %vm1162
        %v1164 = vsel %vm1163, %v1156, %v1160
        %v1165 = vand.u32 2147483647, %v1082
        %vm1166 = vcmp.eq.f32.partialorder %v1165, 8.507059e+37
        %v1167 = vand.u32 %v1082, 2147483648
        %v1168 = vor.u32 1.1754944e-38, %v1167
        %v1169 = vsel %vm1166, %v1168, %v1164
        %v1170 = vmul.f32 1.0, %v1169
        %v1171 = vrcp.pop %v1083
        %v1172 = vmul.f32 %v1083, %v1171
        %v1173 = vsub.f32 1.0, %v1172
        %v1174 = vmul.f32 %v1171, %v1173
        %v1175 = vadd.f32 %v1171, %v1174
        %vm1176 = vweird.f32 %v1083
        %vm1177 = vweird.f32 %v1171
        %vm1178 = vmor %vm1176, %vm1177
        %v1179 = vsel %vm1178, %v1171, %v1175
        %v1180 = vand.u32 2147483647, %v1083
        %vm1181 = vcmp.eq.f32.partialorder %v1180, 8.507059e+37
        %v1182 = vand.u32 %v1083, 2147483648
        %v1183 = vor.u32 1.1754944e-38, %v1182
        %v1184 = vsel %vm1181, %v1183, %v1179
        %v1185 = vmul.f32 1.0, %v1184
        %v1186 = vrcp.pop %v1084
        %v1187 = vmul.f32 %v1084, %v1186
        %v1188 = vsub.f32 1.0, %v1187
        %v1189 = vmul.f32 %v1186, %v1188
        %v1190 = vadd.f32 %v1186, %v1189
        %vm1191 = vweird.f32 %v1084
        %vm1192 = vweird.f32 %v1186
        %vm1193 = vmor %vm1191, %vm1192
        %v1194 = vsel %vm1193, %v1186, %v1190
        %v1195 = vand.u32 2147483647, %v1084
        %vm1196 = vcmp.eq.f32.partialorder %v1195, 8.507059e+37
        %v1197 = vand.u32 %v1084, 2147483648
        %v1198 = vor.u32 1.1754944e-38, %v1197
        %v1199 = vsel %vm1196, %v1198, %v1194
        %v1200 = vmul.f32 1.0, %v1199
        %v1201 = vrcp.pop %v1085
        %v1202 = vmul.f32 %v1085, %v1201
        %v1203 = vsub.f32 1.0, %v1202
        %v1204 = vmul.f32 %v1201, %v1203
        %v1205 = vadd.f32 %v1201, %v1204
        %vm1206 = vweird.f32 %v1085
        %vm1207 = vweird.f32 %v1201
        %vm1208 = vmor %vm1206, %vm1207
        %v1209 = vsel %vm1208, %v1201, %v1205
        %v1210 = vand.u32 2147483647, %v1085
        %vm1211 = vcmp.eq.f32.partialorder %v1210, 8.507059e+37
        %v1212 = vand.u32 %v1085, 2147483648
        %v1213 = vor.u32 1.1754944e-38, %v1212
        %v1214 = vsel %vm1211, %v1213, %v1209
        %v1215 = vmul.f32 1.0, %v1214
        %v1216 = vrcp.pop %v1086
        %v1217 = vmul.f32 %v1086, %v1216
        %v1218 = vsub.f32 1.0, %v1217
        %v1219 = vmul.f32 %v1216, %v1218
        %v1220 = vadd.f32 %v1216, %v1219
        %vm1221 = vweird.f32 %v1086
        %vm1222 = vweird.f32 %v1216
        %vm1223 = vmor %vm1221, %vm1222
        %v1224 = vsel %vm1223, %v1216, %v1220
        %v1225 = vand.u32 2147483647, %v1086
        %vm1226 = vcmp.eq.f32.partialorder %v1225, 8.507059e+37
        %v1227 = vand.u32 %v1086, 2147483648
        %v1228 = vor.u32 1.1754944e-38, %v1227
        %v1229 = vsel %vm1226, %v1228, %v1224
        %v1230 = vmul.f32 1.0, %v1229
        %v1231 = vrcp.pop %v1087
        %v1232 = vmul.f32 %v1087, %v1231
        %v1233 = vsub.f32 1.0, %v1232
        %v1234 = vmul.f32 %v1231, %v1233
        %v1235 = vadd.f32 %v1231, %v1234
        %vm1236 = vweird.f32 %v1087
        %vm1237 = vweird.f32 %v1231
        %vm1238 = vmor %vm1236, %vm1237
        %v1239 = vsel %vm1238, %v1231, %v1235
        %v1240 = vand.u32 2147483647, %v1087
        %vm1241 = vcmp.eq.f32.partialorder %v1240, 8.507059e+37
        %v1242 = vand.u32 %v1087, 2147483648
        %v1243 = vor.u32 1.1754944e-38, %v1242
        %v1244 = vsel %vm1241, %v1243, %v1239
        %v1245 = vmul.f32 1.0, %v1244
        %v1246 = vrcp.pop %v1088
        %v1247 = vmul.f32 %v1088, %v1246
        %v1248 = vsub.f32 1.0, %v1247
        %v1249 = vmul.f32 %v1246, %v1248
        %v1250 = vadd.f32 %v1246, %v1249
        %vm1251 = vweird.f32 %v1088
        %vm1252 = vweird.f32 %v1246
        %vm1253 = vmor %vm1251, %vm1252
        %v1254 = vsel %vm1253, %v1246, %v1250
        %v1255 = vand.u32 2147483647, %v1088
        %vm1256 = vcmp.eq.f32.partialorder %v1255, 8.507059e+37
        %v1257 = vand.u32 %v1088, 2147483648
        %v1258 = vor.u32 1.1754944e-38, %v1257
        %v1259 = vsel %vm1256, %v1258, %v1254
        %v1260 = vmul.f32 1.0, %v1259
        %v1261 = vrcp.pop %v1089
        %v1262 = vmul.f32 %v1089, %v1261
        %v1263 = vsub.f32 1.0, %v1262
        %v1264 = vmul.f32 %v1261, %v1263
        %v1265 = vadd.f32 %v1261, %v1264
        %vm1266 = vweird.f32 %v1089
        %vm1267 = vweird.f32 %v1261
        %vm1268 = vmor %vm1266, %vm1267
        %v1269 = vsel %vm1268, %v1261, %v1265
        %v1270 = vand.u32 2147483647, %v1089
        %vm1271 = vcmp.eq.f32.partialorder %v1270, 8.507059e+37
        %v1272 = vand.u32 %v1089, 2147483648
        %v1273 = vor.u32 1.1754944e-38, %v1272
        %v1274 = vsel %vm1271, %v1273, %v1269
        %v1275 = vmul.f32 1.0, %v1274
        %v1276 = vrcp.pop %v1090
        %v1277 = vmul.f32 %v1090, %v1276
        %v1278 = vsub.f32 1.0, %v1277
        %v1279 = vmul.f32 %v1276, %v1278
        %v1280 = vadd.f32 %v1276, %v1279
        %vm1281 = vweird.f32 %v1090
        %vm1282 = vweird.f32 %v1276
        %vm1283 = vmor %vm1281, %vm1282
        %v1284 = vsel %vm1283, %v1276, %v1280
        %v1285 = vand.u32 2147483647, %v1090
        %vm1286 = vcmp.eq.f32.partialorder %v1285, 8.507059e+37
        %v1287 = vand.u32 %v1090, 2147483648
        %v1288 = vor.u32 1.1754944e-38, %v1287
        %v1289 = vsel %vm1286, %v1288, %v1284
        %v1290 = vmul.f32 1.0, %v1289
        %v1291 = vrcp.pop %v1091
        %v1292 = vmul.f32 %v1091, %v1291
        %v1293 = vsub.f32 1.0, %v1292
        %v1294 = vmul.f32 %v1291, %v1293
        %v1295 = vadd.f32 %v1291, %v1294
        %vm1296 = vweird.f32 %v1091
        %vm1297 = vweird.f32 %v1291
        %vm1298 = vmor %vm1296, %vm1297
        %v1299 = vsel %vm1298, %v1291, %v1295
        %v1300 = vand.u32 2147483647, %v1091
        %vm1301 = vcmp.eq.f32.partialorder %v1300, 8.507059e+37
        %v1302 = vand.u32 %v1091, 2147483648
        %v1303 = vor.u32 1.1754944e-38, %v1302
        %v1304 = vsel %vm1301, %v1303, %v1299
        %v1305 = vmul.f32 1.0, %v1304
        %v1306 = vrcp.pop %v1092
        %v1307 = vmul.f32 %v1092, %v1306
        %v1308 = vsub.f32 1.0, %v1307
        %v1309 = vmul.f32 %v1306, %v1308
        %v1310 = vadd.f32 %v1306, %v1309
        %vm1311 = vweird.f32 %v1092
        %vm1312 = vweird.f32 %v1306
        %vm1313 = vmor %vm1311, %vm1312
        %v1314 = vsel %vm1313, %v1306, %v1310
        %v1315 = vand.u32 2147483647, %v1092
        %vm1316 = vcmp.eq.f32.partialorder %v1315, 8.507059e+37
        %v1317 = vand.u32 %v1092, 2147483648
        %v1318 = vor.u32 1.1754944e-38, %v1317
        %v1319 = vsel %vm1316, %v1318, %v1314
        %v1320 = vmul.f32 1.0, %v1319
        %v1321 = vrcp.pop %v1093
        %v1322 = vmul.f32 %v1093, %v1321
        %v1323 = vsub.f32 1.0, %v1322
        %v1324 = vmul.f32 %v1321, %v1323
        %v1325 = vadd.f32 %v1321, %v1324
        %vm1326 = vweird.f32 %v1093
        %vm1327 = vweird.f32 %v1321
        %vm1328 = vmor %vm1326, %vm1327
        %v1329 = vsel %vm1328, %v1321, %v1325
        %v1330 = vand.u32 2147483647, %v1093
        %vm1331 = vcmp.eq.f32.partialorder %v1330, 8.507059e+37
        %v1332 = vand.u32 %v1093, 2147483648
        %v1333 = vor.u32 1.1754944e-38, %v1332
        %v1334 = vsel %vm1331, %v1333, %v1329
        %v1335 = vmul.f32 1.0, %v1334
        %v1336 = vrcp.pop %v1094
        %v1337 = vmul.f32 %v1094, %v1336
        %v1338 = vsub.f32 1.0, %v1337
        %v1339 = vmul.f32 %v1336, %v1338
        %v1340 = vadd.f32 %v1336, %v1339
        %vm1341 = vweird.f32 %v1094
        %vm1342 = vweird.f32 %v1336
        %vm1343 = vmor %vm1341, %vm1342
        %v1344 = vsel %vm1343, %v1336, %v1340
        %v1345 = vand.u32 2147483647, %v1094
        %vm1346 = vcmp.eq.f32.partialorder %v1345, 8.507059e+37
        %v1347 = vand.u32 %v1094, 2147483648
        %v1348 = vor.u32 1.1754944e-38, %v1347
        %v1349 = vsel %vm1346, %v1348, %v1344
        %v1350 = vmul.f32 1.0, %v1349
        %v1351 = vrcp.pop %v1095
        %v1352 = vmul.f32 %v1095, %v1351
        %v1353 = vsub.f32 1.0, %v1352
        %v1354 = vmul.f32 %v1351, %v1353
        %v1355 = vadd.f32 %v1351, %v1354
        %vm1356 = vweird.f32 %v1095
        %vm1357 = vweird.f32 %v1351
        %vm1358 = vmor %vm1356, %vm1357
        %v1359 = vsel %vm1358, %v1351, %v1355
        %v1360 = vand.u32 2147483647, %v1095
        %vm1361 = vcmp.eq.f32.partialorder %v1360, 8.507059e+37
        %v1362 = vand.u32 %v1095, 2147483648
        %v1363 = vor.u32 1.1754944e-38, %v1362
        %v1364 = vsel %vm1361, %v1363, %v1359
        %v1365 = vmul.f32 1.0, %v1364
        %v1366 = vrcp.pop %v1096
        %v1367 = vmul.f32 %v1096, %v1366
        %v1368 = vsub.f32 1.0, %v1367
        %v1369 = vmul.f32 %v1366, %v1368
        %v1370 = vadd.f32 %v1366, %v1369
        %vm1371 = vweird.f32 %v1096
        %vm1372 = vweird.f32 %v1366
        %vm1373 = vmor %vm1371, %vm1372
        %v1374 = vsel %vm1373, %v1366, %v1370
        %v1375 = vand.u32 2147483647, %v1096
        %vm1376 = vcmp.eq.f32.partialorder %v1375, 8.507059e+37
        %v1377 = vand.u32 %v1096, 2147483648
        %v1378 = vor.u32 1.1754944e-38, %v1377
        %v1379 = vsel %vm1376, %v1378, %v1374
        %v1380 = vmul.f32 1.0, %v1379
        %v1381 = vrcp.pop %v1097
        %v1382 = vmul.f32 %v1097, %v1381
        %v1383 = vsub.f32 1.0, %v1382
        %v1384 = vmul.f32 %v1381, %v1383
        %v1385 = vadd.f32 %v1381, %v1384
        %vm1386 = vweird.f32 %v1097
        %vm1387 = vweird.f32 %v1381
        %vm1388 = vmor %vm1386, %vm1387
        %v1389 = vsel %vm1388, %v1381, %v1385
        %v1390 = vand.u32 2147483647, %v1097
        %vm1391 = vcmp.eq.f32.partialorder %v1390, 8.507059e+37
        %v1392 = vand.u32 %v1097, 2147483648
        %v1393 = vor.u32 1.1754944e-38, %v1392
        %v1394 = vsel %vm1391, %v1393, %v1389
        %v1395 = vmul.f32 1.0, %v1394
        %v1396 = vrcp.pop %v1098
        %v1397 = vmul.f32 %v1098, %v1396
        %v1398 = vsub.f32 1.0, %v1397
        %v1399 = vmul.f32 %v1396, %v1398
        %v1400 = vadd.f32 %v1396, %v1399
        %vm1401 = vweird.f32 %v1098
        %vm1402 = vweird.f32 %v1396
        %vm1403 = vmor %vm1401, %vm1402
        %v1404 = vsel %vm1403, %v1396, %v1400
        %v1405 = vand.u32 2147483647, %v1098
        %vm1406 = vcmp.eq.f32.partialorder %v1405, 8.507059e+37
        %v1407 = vand.u32 %v1098, 2147483648
        %v1408 = vor.u32 1.1754944e-38, %v1407
        %v1409 = vsel %vm1406, %v1408, %v1404
        %v1410 = vmul.f32 1.0, %v1409
        %v1411 = vrcp.pop %v1099
        %v1412 = vmul.f32 %v1099, %v1411
        %v1413 = vsub.f32 1.0, %v1412
        %v1414 = vmul.f32 %v1411, %v1413
        %v1415 = vadd.f32 %v1411, %v1414
        %vm1416 = vweird.f32 %v1099
        %vm1417 = vweird.f32 %v1411
        %vm1418 = vmor %vm1416, %vm1417
        %v1419 = vsel %vm1418, %v1411, %v1415
        %v1420 = vand.u32 2147483647, %v1099
        %vm1421 = vcmp.eq.f32.partialorder %v1420, 8.507059e+37
        %v1422 = vand.u32 %v1099, 2147483648
        %v1423 = vor.u32 1.1754944e-38, %v1422
        %v1424 = vsel %vm1421, %v1423, %v1419
        %v1425 = vmul.f32 1.0, %v1424
        %v1426 = vrcp.pop %v1100
        %v1427 = vmul.f32 %v1100, %v1426
        %v1428 = vsub.f32 1.0, %v1427
        %v1429 = vmul.f32 %v1426, %v1428
        %v1430 = vadd.f32 %v1426, %v1429
        %vm1431 = vweird.f32 %v1100
        %vm1432 = vweird.f32 %v1426
        %vm1433 = vmor %vm1431, %vm1432
        %v1434 = vsel %vm1433, %v1426, %v1430
        %v1435 = vand.u32 2147483647, %v1100
        %vm1436 = vcmp.eq.f32.partialorder %v1435, 8.507059e+37
        %v1437 = vand.u32 %v1100, 2147483648
        %v1438 = vor.u32 1.1754944e-38, %v1437
        %v1439 = vsel %vm1436, %v1438, %v1434
        %v1440 = vmul.f32 1.0, %v1439
        %v1441 = vrcp.pop %v1101
        %v1442 = vmul.f32 %v1101, %v1441
        %v1443 = vsub.f32 1.0, %v1442
        %v1444 = vmul.f32 %v1441, %v1443
        %v1445 = vadd.f32 %v1441, %v1444
        %vm1446 = vweird.f32 %v1101
        %vm1447 = vweird.f32 %v1441
        %vm1448 = vmor %vm1446, %vm1447
        %v1449 = vsel %vm1448, %v1441, %v1445
        %v1450 = vand.u32 2147483647, %v1101
        %vm1451 = vcmp.eq.f32.partialorder %v1450, 8.507059e+37
        %v1452 = vand.u32 %v1101, 2147483648
        %v1453 = vor.u32 1.1754944e-38, %v1452
        %v1454 = vsel %vm1451, %v1453, %v1449
        %v1455 = vmul.f32 1.0, %v1454
        %v1456 = vrcp.pop %v1102
        %v1457 = vmul.f32 %v1102, %v1456
        %v1458 = vsub.f32 1.0, %v1457
        %v1459 = vmul.f32 %v1456, %v1458
        %v1460 = vadd.f32 %v1456, %v1459
        %vm1461 = vweird.f32 %v1102
        %vm1462 = vweird.f32 %v1456
        %vm1463 = vmor %vm1461, %vm1462
        %v1464 = vsel %vm1463, %v1456, %v1460
        %v1465 = vand.u32 2147483647, %v1102
        %vm1466 = vcmp.eq.f32.partialorder %v1465, 8.507059e+37
        %v1467 = vand.u32 %v1102, 2147483648
        %v1468 = vor.u32 1.1754944e-38, %v1467
        %v1469 = vsel %vm1466, %v1468, %v1464
        %v1470 = vmul.f32 1.0, %v1469
        %v1471 = vrcp.pop %v1103
        %v1472 = vmul.f32 %v1103, %v1471
        %v1473 = vsub.f32 1.0, %v1472
        %v1474 = vmul.f32 %v1471, %v1473
        %v1475 = vadd.f32 %v1471, %v1474
        %vm1476 = vweird.f32 %v1103
        %vm1477 = vweird.f32 %v1471
        %vm1478 = vmor %vm1476, %vm1477
        %v1479 = vsel %vm1478, %v1471, %v1475
        %v1480 = vand.u32 2147483647, %v1103
        %vm1481 = vcmp.eq.f32.partialorder %v1480, 8.507059e+37
        %v1482 = vand.u32 %v1103, 2147483648
        %v1483 = vor.u32 1.1754944e-38, %v1482
        %v1484 = vsel %vm1481, %v1483, %v1479
        %v1485 = vmul.f32 1.0, %v1484
        %v1486 = vrcp.pop %v1104
        %v1487 = vmul.f32 %v1104, %v1486
        %v1488 = vsub.f32 1.0, %v1487
        %v1489 = vmul.f32 %v1486, %v1488
        %v1490 = vadd.f32 %v1486, %v1489
        %vm1491 = vweird.f32 %v1104
        %vm1492 = vweird.f32 %v1486
        %vm1493 = vmor %vm1491, %vm1492
        %v1494 = vsel %vm1493, %v1486, %v1490
        %v1495 = vand.u32 2147483647, %v1104
        %vm1496 = vcmp.eq.f32.partialorder %v1495, 8.507059e+37
        %v1497 = vand.u32 %v1104, 2147483648
        %v1498 = vor.u32 1.1754944e-38, %v1497
        %v1499 = vsel %vm1496, %v1498, %v1494
        %v1500 = vmul.f32 1.0, %v1499
        %v1501 = vrcp.pop %v1105
        %v1502 = vmul.f32 %v1105, %v1501
        %v1503 = vsub.f32 1.0, %v1502
        %v1504 = vmul.f32 %v1501, %v1503
        %v1505 = vadd.f32 %v1501, %v1504
        %vm1506 = vweird.f32 %v1105
        %vm1507 = vweird.f32 %v1501
        %vm1508 = vmor %vm1506, %vm1507
        %v1509 = vsel %vm1508, %v1501, %v1505
        %v1510 = vand.u32 2147483647, %v1105
        %vm1511 = vcmp.eq.f32.partialorder %v1510, 8.507059e+37
        %v1512 = vand.u32 %v1105, 2147483648
        %v1513 = vor.u32 1.1754944e-38, %v1512
        %v1514 = vsel %vm1511, %v1513, %v1509
        %v1515 = vmul.f32 1.0, %v1514
        %v1516 = vrcp.pop %v1106
        %v1517 = vmul.f32 %v1106, %v1516
        %v1518 = vsub.f32 1.0, %v1517
        %v1519 = vmul.f32 %v1516, %v1518
        %v1520 = vadd.f32 %v1516, %v1519
        %vm1521 = vweird.f32 %v1106
        %vm1522 = vweird.f32 %v1516
        %vm1523 = vmor %vm1521, %vm1522
        %v1524 = vsel %vm1523, %v1516, %v1520
        %v1525 = vand.u32 2147483647, %v1106
        %vm1526 = vcmp.eq.f32.partialorder %v1525, 8.507059e+37
        %v1527 = vand.u32 %v1106, 2147483648
        %v1528 = vor.u32 1.1754944e-38, %v1527
        %v1529 = vsel %vm1526, %v1528, %v1524
        %v1530 = vmul.f32 1.0, %v1529
        %v1531 = vrcp.pop %v1107
        %v1532 = vmul.f32 %v1107, %v1531
        %v1533 = vsub.f32 1.0, %v1532
        %v1534 = vmul.f32 %v1531, %v1533
        %v1535 = vadd.f32 %v1531, %v1534
        %vm1536 = vweird.f32 %v1107
        %vm1537 = vweird.f32 %v1531
        %vm1538 = vmor %vm1536, %vm1537
        %v1539 = vsel %vm1538, %v1531, %v1535
        %v1540 = vand.u32 2147483647, %v1107
        %vm1541 = vcmp.eq.f32.partialorder %v1540, 8.507059e+37
        %v1542 = vand.u32 %v1107, 2147483648
        %v1543 = vor.u32 1.1754944e-38, %v1542
        %v1544 = vsel %vm1541, %v1543, %v1539
        %v1545 = vmul.f32 1.0, %v1544
        %v1546 = vrcp.pop %v1108
        %v1547 = vmul.f32 %v1108, %v1546
        %v1548 = vsub.f32 1.0, %v1547
        %v1549 = vmul.f32 %v1546, %v1548
        %v1550 = vadd.f32 %v1546, %v1549
        %vm1551 = vweird.f32 %v1108
        %vm1552 = vweird.f32 %v1546
        %vm1553 = vmor %vm1551, %vm1552
        %v1554 = vsel %vm1553, %v1546, %v1550
        %v1555 = vand.u32 2147483647, %v1108
        %vm1556 = vcmp.eq.f32.partialorder %v1555, 8.507059e+37
        %v1557 = vand.u32 %v1108, 2147483648
        %v1558 = vor.u32 1.1754944e-38, %v1557
        %v1559 = vsel %vm1556, %v1558, %v1554
        %v1560 = vmul.f32 1.0, %v1559
        %v1561 = vrcp.pop %v1109
        %v1562 = vmul.f32 %v1109, %v1561
        %v1563 = vsub.f32 1.0, %v1562
        %v1564 = vmul.f32 %v1561, %v1563
        %v1565 = vadd.f32 %v1561, %v1564
        %vm1566 = vweird.f32 %v1109
        %vm1567 = vweird.f32 %v1561
        %vm1568 = vmor %vm1566, %vm1567
        %v1569 = vsel %vm1568, %v1561, %v1565
        %v1570 = vand.u32 2147483647, %v1109
        %vm1571 = vcmp.eq.f32.partialorder %v1570, 8.507059e+37
        %v1572 = vand.u32 %v1109, 2147483648
        %v1573 = vor.u32 1.1754944e-38, %v1572
        %v1574 = vsel %vm1571, %v1573, %v1569
        %v1575 = vmul.f32 1.0, %v1574
        %v1576 = vrcp.pop %v1110
        %v1577 = vmul.f32 %v1110, %v1576
        %v1578 = vsub.f32 1.0, %v1577
        %v1579 = vmul.f32 %v1576, %v1578
        %v1580 = vadd.f32 %v1576, %v1579
        %vm1581 = vweird.f32 %v1110
        %vm1582 = vweird.f32 %v1576
        %vm1583 = vmor %vm1581, %vm1582
        %v1584 = vsel %vm1583, %v1576, %v1580
        %v1585 = vand.u32 2147483647, %v1110
        %vm1586 = vcmp.eq.f32.partialorder %v1585, 8.507059e+37
        %v1587 = vand.u32 %v1110, 2147483648
        %v1588 = vor.u32 1.1754944e-38, %v1587
        %v1589 = vsel %vm1586, %v1588, %v1584
        %v1590 = vmul.f32 1.0, %v1589
        %vm1591 = vcmask 7168
        %1592 = vst.msk [vmem:[%s282] sm:$0xff] %vm1591, %v1125
        %1593 = vst.msk [vmem:[%s282 + $0x8] sm:$0xff] %vm1591, %v1140
        %1594 = vst.msk [vmem:[%s282 + $0x10] sm:$0xff] %vm1591, %v1155
        %1595 = vst.msk [vmem:[%s282 + $0x18] sm:$0xff] %vm1591, %v1170
        %1596 = vst.msk [vmem:[%s282 + $0x20] sm:$0xff] %vm1591, %v1185
        %1597 = vst.msk [vmem:[%s282 + $0x28] sm:$0xff] %vm1591, %v1200
        %1598 = vst.msk [vmem:[%s282 + $0x30] sm:$0xff] %vm1591, %v1215
        %1599 = vst.msk [vmem:[%s282 + $0x38] sm:$0xff] %vm1591, %v1230
        %1600 = vst.msk [vmem:[%s282 + $0x40] sm:$0xff] %vm1591, %v1245
        %1601 = vst.msk [vmem:[%s282 + $0x48] sm:$0xff] %vm1591, %v1260
        %1602 = vst.msk [vmem:[%s282 + $0x50] sm:$0xff] %vm1591, %v1275
        %1603 = vst.msk [vmem:[%s282 + $0x58] sm:$0xff] %vm1591, %v1290
        %1604 = vst.msk [vmem:[%s282 + $0x60] sm:$0xff] %vm1591, %v1305
        %1605 = vst.msk [vmem:[%s282 + $0x68] sm:$0xff] %vm1591, %v1320
        %1606 = vst.msk [vmem:[%s282 + $0x70] sm:$0xff] %vm1591, %v1335
        %1607 = vst.msk [vmem:[%s282 + $0x78] sm:$0xff] %vm1591, %v1350
        %1608 = vst.msk [vmem:[%s282 + $0x80] sm:$0xff] %vm1591, %v1365
        %1609 = vst.msk [vmem:[%s282 + $0x88] sm:$0xff] %vm1591, %v1380
        %1610 = vst.msk [vmem:[%s282 + $0x90] sm:$0xff] %vm1591, %v1395
        %1611 = vst.msk [vmem:[%s282 + $0x98] sm:$0xff] %vm1591, %v1410
        %1612 = vst.msk [vmem:[%s282 + $0xa0] sm:$0xff] %vm1591, %v1425
        %1613 = vst.msk [vmem:[%s282 + $0xa8] sm:$0xff] %vm1591, %v1440
        %1614 = vst.msk [vmem:[%s282 + $0xb0] sm:$0xff] %vm1591, %v1455
        %1615 = vst.msk [vmem:[%s282 + $0xb8] sm:$0xff] %vm1591, %v1470
        %1616 = vst.msk [vmem:[%s282 + $0xc0] sm:$0xff] %vm1591, %v1485
        %1617 = vst.msk [vmem:[%s282 + $0xc8] sm:$0xff] %vm1591, %v1500
        %1618 = vst.msk [vmem:[%s282 + $0xd0] sm:$0xff] %vm1591, %v1515
        %1619 = vst.msk [vmem:[%s282 + $0xd8] sm:$0xff] %vm1591, %v1530
        %1620 = vst.msk [vmem:[%s282 + $0xe0] sm:$0xff] %vm1591, %v1545
        %1621 = vst.msk [vmem:[%s282 + $0xe8] sm:$0xff] %vm1591, %v1560
        %1622 = vst.msk [vmem:[%s282 + $0xf0] sm:$0xff] %vm1591, %v1575
        %1623 = vst.msk [vmem:[%s282 + $0xf8] sm:$0xff] %vm1591, %v1590
        %s1624 = sand.u32 %s180, 1
        %s1625 = sand.u32 %s180, 1
        %s1626 = smul.addr %s1625, 256
        %s1627 = scalar_lea.vmem [#allocation3], %s1626
        // Predicated region
        $region49: #{tpu_custom_call.1} parent=47 // pred_check
          %p1628 = pneg %p190
        $region50: #{tpu_custom_call.1} parent=47 // pred_check_branch
          %1630 = sbr.rel (%p1628) target = $region52
        $region51: #{tpu_custom_call.1} parent=47 // pred_region
          %s1631 = smul.u32 32, %s20
          %s1632 = ssub.s32 38, %s1631
          %p1633 = scmp.lt.s32.totalorder %s1632, 32
          %s1634 = scalar_select %p1633, %s1632, 32
          %s1635 = smul.u32 8, %s1634
          %p1636 = scmp.ne.s32.totalorder 0, %s1635
          %s1637 = smul.addr %s1631, 8
          %s1638 = scalar_lea.vmem %s7, %s1637
          // Predicated region
          $region53: #{tpu_custom_call.1} parent=51 // pred_check
            %p1639 = pneg %p1636
          $region54: #{tpu_custom_call.1} parent=51 // pred_check_branch
            %1641 = sbr.rel (%p1639) target = $region56
          $region55: #{tpu_custom_call.1} parent=51 // pred_region
            // Predicated region
            $region57: #{tpu_custom_call.1} parent=55 // pred_check
              _
            $region58: #{tpu_custom_call.1} parent=55 // pred_check_branch
              %1643 = sbr.rel (0) target = $region60
            $region59: #{tpu_custom_call.1} parent=55 // pred_region
              // Predicated region
              $region79: #{tpu_custom_call.1} parent=59 // pred_check
                _
              $region80: #{tpu_custom_call.1} parent=59 // pred_check_branch
                %1755 = sbr.rel (0) target = $region82
              $region81: #{tpu_custom_call.1} parent=59 // pred_region
                %s1756 = sshrl.u32 %s1634, 5
                // While loop
                $region83: #{tpu_custom_call.1} parent=81 // loop_pre_header
                  _
                $region84: #{tpu_custom_call.1} parent=81 // loop_header
                  %s1758 = sphi 0, %s1760
                  %p1759 = scmp.ge.s32.totalorder %s1758, %s1756
                  %s1763 = sphi 0, %s1832
                  %s1764 = sphi %s1627, %s1835
                  %s1765 = sphi %s1638, %s1836
                $region85: #{tpu_custom_call.1} parent=81 // loop_header_branch
                  %1762 = sbr.rel (%p1759) target = $region89
                $region86: #{tpu_custom_call.1} parent=81 // loop_body
                  %v1766 = vld [vmem:[%s1764] sm:$0xff]
                  %1767 = vst [vmem:[%s1765] sm:$0xff] %v1766
                  %v1768 = vld [vmem:[%s1764 + $0x8] sm:$0xff]
                  %1769 = vst [vmem:[%s1765 + $0x8] sm:$0xff] %v1768
                  %v1770 = vld [vmem:[%s1764 + $0x10] sm:$0xff]
                  %1771 = vst [vmem:[%s1765 + $0x10] sm:$0xff] %v1770
                  %v1772 = vld [vmem:[%s1764 + $0x18] sm:$0xff]
                  %1773 = vst [vmem:[%s1765 + $0x18] sm:$0xff] %v1772
                  %v1774 = vld [vmem:[%s1764 + $0x20] sm:$0xff]
                  %1775 = vst [vmem:[%s1765 + $0x20] sm:$0xff] %v1774
                  %v1776 = vld [vmem:[%s1764 + $0x28] sm:$0xff]
                  %1777 = vst [vmem:[%s1765 + $0x28] sm:$0xff] %v1776
                  %v1778 = vld [vmem:[%s1764 + $0x30] sm:$0xff]
                  %1779 = vst [vmem:[%s1765 + $0x30] sm:$0xff] %v1778
                  %v1780 = vld [vmem:[%s1764 + $0x38] sm:$0xff]
                  %1781 = vst [vmem:[%s1765 + $0x38] sm:$0xff] %v1780
                  %v1782 = vld [vmem:[%s1764 + $0x40] sm:$0xff]
                  %1783 = vst [vmem:[%s1765 + $0x40] sm:$0xff] %v1782
                  %v1784 = vld [vmem:[%s1764 + $0x48] sm:$0xff]
                  %1785 = vst [vmem:[%s1765 + $0x48] sm:$0xff] %v1784
                  %v1786 = vld [vmem:[%s1764 + $0x50] sm:$0xff]
                  %1787 = vst [vmem:[%s1765 + $0x50] sm:$0xff] %v1786
                  %v1788 = vld [vmem:[%s1764 + $0x58] sm:$0xff]
                  %1789 = vst [vmem:[%s1765 + $0x58] sm:$0xff] %v1788
                  %v1790 = vld [vmem:[%s1764 + $0x60] sm:$0xff]
                  %1791 = vst [vmem:[%s1765 + $0x60] sm:$0xff] %v1790
                  %v1792 = vld [vmem:[%s1764 + $0x68] sm:$0xff]
                  %1793 = vst [vmem:[%s1765 + $0x68] sm:$0xff] %v1792
                  %v1794 = vld [vmem:[%s1764 + $0x70] sm:$0xff]
                  %1795 = vst [vmem:[%s1765 + $0x70] sm:$0xff] %v1794
                  %v1796 = vld [vmem:[%s1764 + $0x78] sm:$0xff]
                  %1797 = vst [vmem:[%s1765 + $0x78] sm:$0xff] %v1796
                  %v1798 = vld [vmem:[%s1764 + $0x80] sm:$0xff]
                  %1799 = vst [vmem:[%s1765 + $0x80] sm:$0xff] %v1798
                  %v1800 = vld [vmem:[%s1764 + $0x88] sm:$0xff]
                  %1801 = vst [vmem:[%s1765 + $0x88] sm:$0xff] %v1800
                  %v1802 = vld [vmem:[%s1764 + $0x90] sm:$0xff]
                  %1803 = vst [vmem:[%s1765 + $0x90] sm:$0xff] %v1802
                  %v1804 = vld [vmem:[%s1764 + $0x98] sm:$0xff]
                  %1805 = vst [vmem:[%s1765 + $0x98] sm:$0xff] %v1804
                  %v1806 = vld [vmem:[%s1764 + $0xa0] sm:$0xff]
                  %1807 = vst [vmem:[%s1765 + $0xa0] sm:$0xff] %v1806
                  %v1808 = vld [vmem:[%s1764 + $0xa8] sm:$0xff]
                  %1809 = vst [vmem:[%s1765 + $0xa8] sm:$0xff] %v1808
                  %v1810 = vld [vmem:[%s1764 + $0xb0] sm:$0xff]
                  %1811 = vst [vmem:[%s1765 + $0xb0] sm:$0xff] %v1810
                  %v1812 = vld [vmem:[%s1764 + $0xb8] sm:$0xff]
                  %1813 = vst [vmem:[%s1765 + $0xb8] sm:$0xff] %v1812
                  %v1814 = vld [vmem:[%s1764 + $0xc0] sm:$0xff]
                  %1815 = vst [vmem:[%s1765 + $0xc0] sm:$0xff] %v1814
                  %v1816 = vld [vmem:[%s1764 + $0xc8] sm:$0xff]
                  %1817 = vst [vmem:[%s1765 + $0xc8] sm:$0xff] %v1816
                  %v1818 = vld [vmem:[%s1764 + $0xd0] sm:$0xff]
                  %1819 = vst [vmem:[%s1765 + $0xd0] sm:$0xff] %v1818
                  %v1820 = vld [vmem:[%s1764 + $0xd8] sm:$0xff]
                  %1821 = vst [vmem:[%s1765 + $0xd8] sm:$0xff] %v1820
                  %v1822 = vld [vmem:[%s1764 + $0xe0] sm:$0xff]
                  %1823 = vst [vmem:[%s1765 + $0xe0] sm:$0xff] %v1822
                  %v1824 = vld [vmem:[%s1764 + $0xe8] sm:$0xff]
                  %1825 = vst [vmem:[%s1765 + $0xe8] sm:$0xff] %v1824
                  %v1826 = vld [vmem:[%s1764 + $0xf0] sm:$0xff]
                  %1827 = vst [vmem:[%s1765 + $0xf0] sm:$0xff] %v1826
                  %v1828 = vld [vmem:[%s1764 + $0xf8] sm:$0xff]
                  %1829 = vst [vmem:[%s1765 + $0xf8] sm:$0xff] %v1828
                  %s1830 = sadd.s32 1, %s1763
                  %p1831 = scmp.ge.s32.totalorder %s1830, %s1756
                  %s1832 = scalar_select %p1831, 0, %s1830
                  %s1833 = smul.u32 %s1832, 256
                  %s1834 = smul.u32 %s1832, 256
                  %s1835 = scalar_lea.vmem %s1627, %s1833 [#allocation3]
                  %s1836 = scalar_lea.vmem %s1638, %s1834
                $region87: #{tpu_custom_call.1} parent=81 // loop_footer
                  %s1760 = sadd.s32 %s1758, 1
                $region88: #{tpu_custom_call.1} parent=81 // loop_footer_branch
                  %1757 = sbr.rel target = $region84
                $region89: #{tpu_custom_call.1} parent=81 // loop_exit
                  _
                %s1837 = sshrl.u32 %s1634, 5
                %s1838 = sand.u32 %s1634, 31
                %s1839 = smul.u32 %s1837, 32
                %s1840 = smul.u32 8, %s1839
                %s1841 = scalar_lea.vmem %s1627, %s1840 [#allocation3]
                %s1842 = smul.u32 8, %s1839
                %s1843 = scalar_lea.vmem %s1638, %s1842
                // While loop
                $region90: #{tpu_custom_call.1} parent=81 // loop_pre_header
                  _
                $region91: #{tpu_custom_call.1} parent=81 // loop_header
                  %s1845 = sphi 0, %s1847
                  %p1846 = scmp.ge.s32.totalorder %s1845, %s1838
                  %s1850 = sphi 0, %s1857
                  %s1851 = sphi %s1841, %s1860
                  %s1852 = sphi %s1843, %s1861
                $region92: #{tpu_custom_call.1} parent=81 // loop_header_branch
                  %1849 = sbr.rel (%p1846) target = $region96
                $region93: #{tpu_custom_call.1} parent=81 // loop_body
                  %v1853 = vld [vmem:[%s1851] sm:$0xff]
                  %1854 = vst [vmem:[%s1852] sm:$0xff] %v1853
                  %s1855 = sadd.s32 1, %s1850
                  %p1856 = scmp.ge.s32.totalorder %s1855, %s1838
                  %s1857 = scalar_select %p1856, 0, %s1855
                  %s1858 = smul.u32 %s1857, 8
                  %s1859 = smul.u32 %s1857, 8
                  %s1860 = scalar_lea.vmem %s1841, %s1858 [#allocation3]
                  %s1861 = scalar_lea.vmem %s1843, %s1859
                $region94: #{tpu_custom_call.1} parent=81 // loop_footer
                  %s1847 = sadd.s32 %s1845, 1
                $region95: #{tpu_custom_call.1} parent=81 // loop_footer_branch
                  %1844 = sbr.rel target = $region91
                $region96: #{tpu_custom_call.1} parent=81 // loop_exit
                  _
              $region82: #{tpu_custom_call.1} parent=59 // pred_fallthru
                _
              // Predicated region
              $region97: #{tpu_custom_call.1} parent=59 // pred_check
                _
              $region98: #{tpu_custom_call.1} parent=59 // pred_check_branch
                %1863 = sbr.rel target = $region100
              $region99: #{tpu_custom_call.1} parent=59 // pred_region
                _
              $region100: #{tpu_custom_call.1} parent=59 // pred_fallthru
                _
            $region60: #{tpu_custom_call.1} parent=55 // pred_fallthru
              _
            // Predicated region
            $region61: #{tpu_custom_call.1} parent=55 // pred_check
              _
            $region62: #{tpu_custom_call.1} parent=55 // pred_check_branch
              %1645 = sbr.rel target = $region64
            $region63: #{tpu_custom_call.1} parent=55 // pred_region
              %s1647 = ssub.s32 256, 1
              %s1648 = sshrl.u32 %s1634, 5
              // While loop
              $region65: #{tpu_custom_call.1} parent=63 // loop_pre_header
                _
              $region66: #{tpu_custom_call.1} parent=63 // loop_header
                %s1650 = sphi 0, %s1652
                %p1651 = scmp.ge.s32.totalorder %s1650, %s1648
                %s1655 = sphi 0, %s1724
                %s1656 = sphi %s1627, %s1727
                %s1657 = sphi %s1638, %s1728
              $region67: #{tpu_custom_call.1} parent=63 // loop_header_branch
                %1654 = sbr.rel (%p1651) target = $region71
              $region68: #{tpu_custom_call.1} parent=63 // loop_body
                %v1658 = vld [vmem:[%s1656] sm:%s1647]
                %1659 = vst [vmem:[%s1657] sm:%s1647] %v1658
                %v1660 = vld [vmem:[%s1656 + $0x8] sm:%s1647]
                %1661 = vst [vmem:[%s1657 + $0x8] sm:%s1647] %v1660
                %v1662 = vld [vmem:[%s1656 + $0x10] sm:%s1647]
                %1663 = vst [vmem:[%s1657 + $0x10] sm:%s1647] %v1662
                %v1664 = vld [vmem:[%s1656 + $0x18] sm:%s1647]
                %1665 = vst [vmem:[%s1657 + $0x18] sm:%s1647] %v1664
                %v1666 = vld [vmem:[%s1656 + $0x20] sm:%s1647]
                %1667 = vst [vmem:[%s1657 + $0x20] sm:%s1647] %v1666
                %v1668 = vld [vmem:[%s1656 + $0x28] sm:%s1647]
                %1669 = vst [vmem:[%s1657 + $0x28] sm:%s1647] %v1668
                %v1670 = vld [vmem:[%s1656 + $0x30] sm:%s1647]
                %1671 = vst [vmem:[%s1657 + $0x30] sm:%s1647] %v1670
                %v1672 = vld [vmem:[%s1656 + $0x38] sm:%s1647]
                %1673 = vst [vmem:[%s1657 + $0x38] sm:%s1647] %v1672
                %v1674 = vld [vmem:[%s1656 + $0x40] sm:%s1647]
                %1675 = vst [vmem:[%s1657 + $0x40] sm:%s1647] %v1674
                %v1676 = vld [vmem:[%s1656 + $0x48] sm:%s1647]
                %1677 = vst [vmem:[%s1657 + $0x48] sm:%s1647] %v1676
                %v1678 = vld [vmem:[%s1656 + $0x50] sm:%s1647]
                %1679 = vst [vmem:[%s1657 + $0x50] sm:%s1647] %v1678
                %v1680 = vld [vmem:[%s1656 + $0x58] sm:%s1647]
                %1681 = vst [vmem:[%s1657 + $0x58] sm:%s1647] %v1680
                %v1682 = vld [vmem:[%s1656 + $0x60] sm:%s1647]
                %1683 = vst [vmem:[%s1657 + $0x60] sm:%s1647] %v1682
                %v1684 = vld [vmem:[%s1656 + $0x68] sm:%s1647]
                %1685 = vst [vmem:[%s1657 + $0x68] sm:%s1647] %v1684
                %v1686 = vld [vmem:[%s1656 + $0x70] sm:%s1647]
                %1687 = vst [vmem:[%s1657 + $0x70] sm:%s1647] %v1686
                %v1688 = vld [vmem:[%s1656 + $0x78] sm:%s1647]
                %1689 = vst [vmem:[%s1657 + $0x78] sm:%s1647] %v1688
                %v1690 = vld [vmem:[%s1656 + $0x80] sm:%s1647]
                %1691 = vst [vmem:[%s1657 + $0x80] sm:%s1647] %v1690
                %v1692 = vld [vmem:[%s1656 + $0x88] sm:%s1647]
                %1693 = vst [vmem:[%s1657 + $0x88] sm:%s1647] %v1692
                %v1694 = vld [vmem:[%s1656 + $0x90] sm:%s1647]
                %1695 = vst [vmem:[%s1657 + $0x90] sm:%s1647] %v1694
                %v1696 = vld [vmem:[%s1656 + $0x98] sm:%s1647]
                %1697 = vst [vmem:[%s1657 + $0x98] sm:%s1647] %v1696
                %v1698 = vld [vmem:[%s1656 + $0xa0] sm:%s1647]
                %1699 = vst [vmem:[%s1657 + $0xa0] sm:%s1647] %v1698
                %v1700 = vld [vmem:[%s1656 + $0xa8] sm:%s1647]
                %1701 = vst [vmem:[%s1657 + $0xa8] sm:%s1647] %v1700
                %v1702 = vld [vmem:[%s1656 + $0xb0] sm:%s1647]
                %1703 = vst [vmem:[%s1657 + $0xb0] sm:%s1647] %v1702
                %v1704 = vld [vmem:[%s1656 + $0xb8] sm:%s1647]
                %1705 = vst [vmem:[%s1657 + $0xb8] sm:%s1647] %v1704
                %v1706 = vld [vmem:[%s1656 + $0xc0] sm:%s1647]
                %1707 = vst [vmem:[%s1657 + $0xc0] sm:%s1647] %v1706
                %v1708 = vld [vmem:[%s1656 + $0xc8] sm:%s1647]
                %1709 = vst [vmem:[%s1657 + $0xc8] sm:%s1647] %v1708
                %v1710 = vld [vmem:[%s1656 + $0xd0] sm:%s1647]
                %1711 = vst [vmem:[%s1657 + $0xd0] sm:%s1647] %v1710
                %v1712 = vld [vmem:[%s1656 + $0xd8] sm:%s1647]
                %1713 = vst [vmem:[%s1657 + $0xd8] sm:%s1647] %v1712
                %v1714 = vld [vmem:[%s1656 + $0xe0] sm:%s1647]
                %1715 = vst [vmem:[%s1657 + $0xe0] sm:%s1647] %v1714
                %v1716 = vld [vmem:[%s1656 + $0xe8] sm:%s1647]
                %1717 = vst [vmem:[%s1657 + $0xe8] sm:%s1647] %v1716
                %v1718 = vld [vmem:[%s1656 + $0xf0] sm:%s1647]
                %1719 = vst [vmem:[%s1657 + $0xf0] sm:%s1647] %v1718
                %v1720 = vld [vmem:[%s1656 + $0xf8] sm:%s1647]
                %1721 = vst [vmem:[%s1657 + $0xf8] sm:%s1647] %v1720
                %s1722 = sadd.s32 1, %s1655
                %p1723 = scmp.ge.s32.totalorder %s1722, %s1648
                %s1724 = scalar_select %p1723, 0, %s1722
                %s1725 = smul.u32 %s1724, 256
                %s1726 = smul.u32 %s1724, 256
                %s1727 = scalar_lea.vmem %s1627, %s1725 [#allocation3]
                %s1728 = scalar_lea.vmem %s1638, %s1726
              $region69: #{tpu_custom_call.1} parent=63 // loop_footer
                %s1652 = sadd.s32 %s1650, 1
              $region70: #{tpu_custom_call.1} parent=63 // loop_footer_branch
                %1649 = sbr.rel target = $region66
              $region71: #{tpu_custom_call.1} parent=63 // loop_exit
                _
              %s1729 = sshrl.u32 %s1634, 5
              %s1730 = sand.u32 %s1634, 31
              %s1731 = smul.u32 %s1729, 32
              %s1732 = smul.u32 8, %s1731
              %s1733 = scalar_lea.vmem %s1627, %s1732 [#allocation3]
              %s1734 = smul.u32 8, %s1731
              %s1735 = scalar_lea.vmem %s1638, %s1734
              // While loop
              $region72: #{tpu_custom_call.1} parent=63 // loop_pre_header
                _
              $region73: #{tpu_custom_call.1} parent=63 // loop_header
                %s1737 = sphi 0, %s1739
                %p1738 = scmp.ge.s32.totalorder %s1737, %s1730
                %s1742 = sphi 0, %s1749
                %s1743 = sphi %s1733, %s1752
                %s1744 = sphi %s1735, %s1753
              $region74: #{tpu_custom_call.1} parent=63 // loop_header_branch
                %1741 = sbr.rel (%p1738) target = $region78
              $region75: #{tpu_custom_call.1} parent=63 // loop_body
                %v1745 = vld [vmem:[%s1743] sm:%s1647]
                %1746 = vst [vmem:[%s1744] sm:%s1647] %v1745
                %s1747 = sadd.s32 1, %s1742
                %p1748 = scmp.ge.s32.totalorder %s1747, %s1730
                %s1749 = scalar_select %p1748, 0, %s1747
                %s1750 = smul.u32 %s1749, 8
                %s1751 = smul.u32 %s1749, 8
                %s1752 = scalar_lea.vmem %s1733, %s1750 [#allocation3]
                %s1753 = scalar_lea.vmem %s1735, %s1751
              $region76: #{tpu_custom_call.1} parent=63 // loop_footer
                %s1739 = sadd.s32 %s1737, 1
              $region77: #{tpu_custom_call.1} parent=63 // loop_footer_branch
                %1736 = sbr.rel target = $region73
              $region78: #{tpu_custom_call.1} parent=63 // loop_exit
                _
            $region64: #{tpu_custom_call.1} parent=55 // pred_fallthru
              _
          $region56: #{tpu_custom_call.1} parent=51 // pred_fallthru
            _
          %1864 = vnop
        $region52: #{tpu_custom_call.1} parent=47 // pred_fallthru
          _
      $region48: #{tpu_custom_call.1} parent=5 // pred_fallthru
        _
      %p1865 = scmp.le.s32.totalorder 2, %s15
      // Predicated region
      $region101: #{tpu_custom_call.1} parent=5 // pred_check
        %p1866 = pneg %p1865
      $region102: #{tpu_custom_call.1} parent=5 // pred_check_branch
        %1868 = sbr.rel (%p1866) target = $region104
      $region103: #{tpu_custom_call.1} parent=5 // pred_region
        %s1869 = ssub.s32 %s15, 2
        // Predicated region
        $region105: #{tpu_custom_call.1} parent=103 // pred_check
          %p1870 = pneg %p196
        $region106: #{tpu_custom_call.1} parent=103 // pred_check_branch
          %1872 = sbr.rel (%p1870) target = $region108
        $region107: #{tpu_custom_call.1} parent=103 // pred_region
          %s1873 = sand.u32 %s181, 1
          %s1874 = sand.u32 %s181, 1
          %s1875 = smul.addr %s1874, 256
          %s1876 = scalar_lea.vmem [#allocation3], %s1875
        $region108: #{tpu_custom_call.1} parent=103 // pred_fallthru
          _
      $region104: #{tpu_custom_call.1} parent=5 // pred_fallthru
        _
    $region6: #{tpu_custom_call.1} parent=1 // loop_footer
      %s19 = sadd.s32 1, %s15
    $region7: #{tpu_custom_call.1} parent=1 // loop_footer_branch
      %14 = sbr.rel target = $region3
    $region8: #{tpu_custom_call.1} parent=1 // loop_exit
      _

</llo_original>
